<compile_context>
chip_gen: v5e
topology: v5e:2x2
jax: 0.10.0
libtpu: 0.0.40
codegen_flags: <defaults>
</compile_context>

<pallas_src>
import math

import jax
import jax.numpy as jnp
from jax import lax
from jax.experimental import pallas as pl
from jax.experimental.pallas import tpu as pltpu

F32 = jnp.float32
BF16 = jnp.bfloat16
VMEM_SPEC = pl.BlockSpec(memory_space=pltpu.MemorySpace.VMEM)


def _rup(n, m):
    return ((n + m - 1) // m) * m


# ---------------------------------------------------------------------------
# Parameter packing: fold adjacent matmuls once, then pack every remaining
# parameter into ONE f32 VMEM slab (one DMA) with static 8-row-aligned offsets.
# ---------------------------------------------------------------------------

class _Packer:
    def __init__(self, lanes):
        self.lanes = lanes
        self.rows = 0
        self.pieces = []
        self.layout = {}

    def add(self, name, arr):
        arr = jnp.asarray(arr, F32)
        r, w = arr.shape
        rp = _rup(max(r, 1), 8)
        piece = jnp.zeros((rp, self.lanes), F32).at[:r, :w].set(arr)
        self.pieces.append(piece)
        self.layout[name] = (self.rows, r, w)   # (row offset, rows, lanes)
        self.rows += rp

    def finish(self):
        return jnp.concatenate(self.pieces, axis=0), self.layout


def prepack_params(params, cfg):
    H_t, n_t = cfg['tweet_hidden_dim'], cfg['tweet_num_layers']
    H_m, n_m = cfg['metadata_hidden_dim'], cfg['metadata_num_layers']
    ks = tuple(cfg['kernel_sizes'])
    C = cfg['num_classes']

    lanes = _rup(max(128, 4 * H_t, 4 * H_m), 128)
    pk = _Packer(lanes)

    # ---- TweetLSTM: fold embedding table into the layer-0 input projection.
    w_ih0, w_hh0, b0 = params['tweet_lstm'][0]
    pk.add('tw_xw0', params['tweet_emb'] @ w_ih0)            # (V_t, 4H)
    pk.add('tw_whh0', w_hh0)
    pk.add('tw_b0', b0)
    for l in range(1, n_t):
        w_ih, w_hh, b = params['tweet_lstm'][l]
        pk.add(f'tw_wih{l}', w_ih)
        pk.add(f'tw_whh{l}', w_hh)
        pk.add(f'tw_b{l}', b)

    # ---- MetadataLSTM (seq len 1, zero init state -> w_hh never needed).
    for l in range(n_m):
        w_ih, _w_hh, b = params['meta_lstm'][l]
        pk.add(f'm_wih{l}', w_ih)
        pk.add(f'm_b{l}', b)

    # ---- AccountDescCNN: fold embedding table into each conv tap.
    for k, (w, b) in zip(ks, params['desc_convs']):          # w: (k, E_d, C_out)
        for dk in range(k):
            pk.add(f'cw{k}_{dk}', params['desc_emb'] @ w[dk])  # (V_d, C_out)
        pk.add(f'cb{k}', b)                                   # (1, C_out)

    # ---- Fold the three branch FCs into the fusion FC.
    f_w, f_b = params['final_fc']            # (3C, C), (1, C)
    tw_w, tw_b = params['tweet_fc']
    m_w, m_b = params['meta_fc']
    d_w, d_b = params['desc_fc']
    pk.add('Wt', tw_w @ f_w[0:C])            # (H_t, C)
    pk.add('Wm', m_w @ f_w[C:2 * C])         # (H_m, C)
    pk.add('Wd', d_w @ f_w[2 * C:3 * C])     # (n_k*C_out, C)
    pk.add('b_all',
           tw_b @ f_w[0:C] + m_b @ f_w[C:2 * C] + d_b @ f_w[2 * C:3 * C] + f_b)

    return pk.finish()                       # (slab, layout)


def _pack_ids(tweet_x, desc_x):
    """One int32 DMA: time-major tweet ids followed by batch-major desc ids."""
    B, T = tweet_x.shape
    L = desc_x.shape[1]
    tw = tweet_x.T.reshape(T * B, 1).astype(jnp.int32)       # row = t*B + b
    de = desc_x.reshape(B * L, 1).astype(jnp.int32)          # row = b*L + l
    tw_rows = _rup(T * B, 8)
    de_rows = _rup(B * L, 8)
    slab = jnp.zeros((tw_rows + de_rows, 1), jnp.int32)
    slab = slab.at[:T * B, :].set(tw).at[tw_rows:tw_rows + B * L, :].set(de)
    return slab, tw_rows


# ----------------------------- fused kernel ---------------------------------

def make_fused_kernel(cfg, layout, B, T, L, tw_rows):
    H_t = cfg['tweet_hidden_dim']
    n_t = cfg['tweet_num_layers']
    H_m = cfg['metadata_hidden_dim']
    n_m = cfg['metadata_num_layers']
    ks = tuple(cfg['kernel_sizes'])
    V_t = cfg['tweet_vocab_size']
    V_d = cfg['desc_vocab_size']
    C_out = cfg['desc_out_channels']
    C = cfg['num_classes']

    def kernel(ids_ref, meta_ref, p_ref, out_ref):
        def P(name):
            r0, r, w = layout[name]
            return p_ref[r0:r0 + r, 0:w]

        def mxu(a, b):
            # bf16 MXU inputs, f32 accumulation (review item: MXU is bf16-native
            # on every generation; VPU/EUP math below stays f32).
            return jnp.dot(a.astype(BF16), b.astype(BF16),
                           preferred_element_type=F32)

        def onehot(ids, vocab):
            iota = lax.broadcasted_iota(jnp.int32, (ids.shape[0], vocab), 1)
            return (ids == iota).astype(F32)

        def lstm_cell(gates, c_prev, H):
            # Two full-width EUP pushes instead of four sliced ones.
            sig = jax.nn.sigmoid(gates)
            th = jnp.tanh(gates)
            i = sig[:, 0:H]
            f = sig[:, H:2 * H]
            o = sig[:, 3 * H:4 * H]
            g = th[:, 2 * H:3 * H]
            c_new = f * c_prev + i * g
            h_new = o * jnp.tanh(c_new)
            return h_new, c_new

        # ================= TweetLSTM (wavefront-pipelined stack) =============
        tweet_ids = ids_ref[0:T * B, :]                      # time-major
        x0 = mxu(onehot(tweet_ids, V_t), P('tw_xw0')) + P('tw_b0')   # (T*B, 4H)

        w_hh = [P(f'tw_whh{l}').astype(BF16) for l in range(n_t)]
        w_ih = [None] + [P(f'tw_wih{l}').astype(BF16) for l in range(1, n_t)]
        b_up = [None] + [P(f'tw_b{l}') for l in range(1, n_t)]

        h = [jnp.zeros((B, H_t), F32) for _ in range(n_t)]
        c = [jnp.zeros((B, H_t), F32) for _ in range(n_t)]
        for s in range(T + n_t - 1):
            h_new, c_new = list(h), list(c)
            for l in range(n_t):
                t = s - l
                if 0 <= t < T:
                    if l == 0:
                        xg = x0[t * B:(t + 1) * B, :]        # contiguous 2-sublane slice
                    else:
                        xg = mxu(h[l - 1], w_ih[l]) + b_up[l]
                    if t == 0:                               # h_{-1} == 0 exactly
                        gates = xg
                    else:
                        gates = xg + mxu(h[l], w_hh[l])
                    h_new[l], c_new[l] = lstm_cell(gates, c[l], H_t)
            h, c = h_new, c_new
        tweet_h = h[n_t - 1]                                 # (B, H_t)

        # ================= MetadataLSTM (seq len 1, zero init) ===============
        x = meta_ref[...]
        for l in range(n_m):
            gates = mxu(x, P(f'm_wih{l}')) + P(f'm_b{l}')
            sig = jax.nn.sigmoid(gates)
            th = jnp.tanh(gates)
            i = sig[:, 0:H_m]
            o = sig[:, 3 * H_m:4 * H_m]
            g = th[:, 2 * H_m:3 * H_m]
            x = o * jnp.tanh(i * g)                          # f*c0 term vanishes (c0 == 0)
        meta_h = x                                           # (B, H_m)

        # ================= AccountDescCNN (embedding folded per tap) =========
        desc_ids = ids_ref[tw_rows:tw_rows + B * L, :]
        oh_d = onehot(desc_ids, V_d)                         # (B*L, V_d)
        Wd = P('Wd')                                         # (n_k*C_out, C)
        desc_contrib = jnp.zeros((B, C), F32)
        for j, k in enumerate(ks):
            L_out = L - k + 1
            taps = [mxu(oh_d, P(f'cw{k}_{dk}')) for dk in range(k)]  # (B*L, C_out) each
            bias = P(f'cb{k}')                               # (1, C_out)
            rows = []
            for b in range(B):
                acc = taps[0][b * L:b * L + L_out, :]
                for dk in range(1, k):
                    acc = acc + taps[dk][b * L + dk:b * L + dk + L_out, :]
                acc = jnp.maximum(acc + bias, 0.0)           # ReLU
                rows.append(jnp.max(acc, axis=0, keepdims=True))   # global max-pool
            pooled = jnp.concatenate(rows, axis=0)           # (B, C_out)
            desc_contrib = desc_contrib + jnp.dot(
                pooled, Wd[j * C_out:(j + 1) * C_out, :], preferred_element_type=F32)

        # ================= fused head (branch FCs folded into fusion FC) =====
        out = (jnp.dot(tweet_h, P('Wt'), preferred_element_type=F32)
               + jnp.dot(meta_h, P('Wm'), preferred_element_type=F32)
               + desc_contrib + P('b_all'))
        out_ref[...] = out

    return kernel


# ----------------------------- forward wrapper -------------------------------

def social_bot_detector_forward(packed_params, layout, tweet_x, metadata_x,
                                desc_x, cfg):
    B, T = tweet_x.shape
    L = desc_x.shape[1]
    ids_slab, tw_rows = _pack_ids(tweet_x, desc_x)
    kernel = make_fused_kernel(cfg, layout, B, T, L, tw_rows)
    return pl.pallas_call(
        kernel,
        out_shape=jax.ShapeDtypeStruct((B, cfg['num_classes']), jnp.float32),
        in_specs=[VMEM_SPEC, VMEM_SPEC, VMEM_SPEC],
        out_specs=VMEM_SPEC,
    )(ids_slab, metadata_x.astype(jnp.float32), packed_params)


# ----------------------------- parameter setup ------------------------------

def _uniform(key, shape, scale):
    return jax.random.uniform(key, shape, jnp.float32, -scale, scale)


def _init_linear(keys, d_in, d_out):
    s = 1.0 / math.sqrt(d_in)
    return _uniform(next(keys), (d_in, d_out), s), _uniform(next(keys), (1, d_out), s)


def _init_lstm_stack(keys, d_in, hidden, num_layers):
    layers = []
    d = d_in
    s = 1.0 / math.sqrt(hidden)
    for _ in range(num_layers):
        w_ih = _uniform(next(keys), (d, 4 * hidden), s)
        w_hh = _uniform(next(keys), (hidden, 4 * hidden), s)
        b = _uniform(next(keys), (1, 4 * hidden), s)   # bias_ih + bias_hh combined
        layers.append((w_ih, w_hh, b))
        d = hidden
    return layers


def init_params(key, cfg):
    keys = iter(jax.random.split(key, 64))
    p = {}
    p['tweet_emb'] = jax.random.normal(
        next(keys), (cfg['tweet_vocab_size'], cfg['tweet_embedding_dim']), jnp.float32)
    p['tweet_lstm'] = _init_lstm_stack(
        keys, cfg['tweet_embedding_dim'], cfg['tweet_hidden_dim'], cfg['tweet_num_layers'])
    p['tweet_fc'] = _init_linear(keys, cfg['tweet_hidden_dim'], cfg['num_classes'])
    p['meta_lstm'] = _init_lstm_stack(
        keys, cfg['metadata_input_dim'], cfg['metadata_hidden_dim'], cfg['metadata_num_layers'])
    p['meta_fc'] = _init_linear(keys, cfg['metadata_hidden_dim'], cfg['num_classes'])
    p['desc_emb'] = jax.random.normal(
        next(keys), (cfg['desc_vocab_size'], cfg['desc_embedding_dim']), jnp.float32)
    p['desc_convs'] = []
    for k in cfg['kernel_sizes']:
        # NOTE: layout is (k, E_d, C_out); real PyTorch Conv1d weights (C_out, E, k)
        # must be permuted (2, 1, 0) before loading into this layout.
        s = 1.0 / math.sqrt(cfg['desc_embedding_dim'] * k)
        w = _uniform(next(keys), (k, cfg['desc_embedding_dim'], cfg['desc_out_channels']), s)
        b = _uniform(next(keys), (1, cfg['desc_out_channels']), s)
        p['desc_convs'].append((w, b))
    p['desc_fc'] = _init_linear(
        keys, cfg['desc_out_channels'] * len(cfg['kernel_sizes']), cfg['num_classes'])
    p['final_fc'] = _init_linear(keys, cfg['num_classes'] * 3, cfg['num_classes'])
    return p


# ----------------------------- main ------------------------------------------

if __name__ == "__main__":
    cfg = dict(
        tweet_vocab_size=50, tweet_embedding_dim=16, tweet_hidden_dim=32,
        tweet_num_layers=2,
        metadata_input_dim=10, metadata_hidden_dim=32, metadata_num_layers=2,
        desc_vocab_size=40, desc_embedding_dim=16, desc_out_channels=8,
        kernel_sizes=(2, 3), num_classes=2,
    )
    B, T_TWEET, L_DESC = 2, 8, 10   # NOTE: latency is ~flat up to B=8; batch more in production.

    params = init_params(jax.random.PRNGKey(0), cfg)
    packed_params, layout = prepack_params(params, cfg)   # one-time param packing

    k1, k2, k3 = jax.random.split(jax.random.PRNGKey(0), 3)
    tweet_x = jax.random.randint(k1, (B, T_TWEET), 0, cfg['tweet_vocab_size'],
                                 dtype=jnp.int32)
    metadata_x = jax.random.normal(k2, (B, cfg['metadata_input_dim']),
                                   dtype=jnp.float32)
    desc_x = jax.random.randint(k3, (B, L_DESC), 0, cfg['desc_vocab_size'],
                                dtype=jnp.int32)

    out = social_bot_detector_forward(packed_params, layout, tweet_x,
                                      metadata_x, desc_x, cfg)
    out = jax.block_until_ready(out)
    assert out.shape == (B, cfg['num_classes'])
    assert bool(jnp.all(jnp.isfinite(out)))
    print("KERNEL_OK")
</pallas_src>

<mosaic_0001>
module attributes {stable_mosaic.version = 11 : i64} {
  func.func @kernel(%arg0: memref<40x1xi32, #tpu.memory_space<vmem>>, %arg1: memref<2x10xf32, #tpu.memory_space<vmem>>, %arg2: memref<536x128xf32, #tpu.memory_space<vmem>>, %arg3: memref<2x2xf32, #tpu.memory_space<vmem>>) attributes {dimension_semantics = [], scalar_prefetch = 0 : i64, scratch_operands = 0 : i64, tpu.core_type = #tpu.core_type<tc>} {
    %c0 = arith.constant 0 : index
    %c0_0 = arith.constant 0 : index
    %0 = vector.load %arg0[%c0, %c0_0] : memref<40x1xi32, #tpu.memory_space<vmem>>, vector<16x1xi32>
    %1 = tpu.iota {dimensions = array<i32: 1>} : vector<16x50xi32>
    %2 = vector.broadcast %0 : vector<16x1xi32> to vector<16x50xi32>
    %3 = arith.cmpi eq, %2, %1 : vector<16x50xi32>
    %4 = arith.extui %3 : vector<16x50xi1> to vector<16x50xi32>
    %5 = arith.sitofp %4 : vector<16x50xi32> to vector<16x50xf32>
    %c0_1 = arith.constant 0 : index
    %c0_2 = arith.constant 0 : index
    %6 = vector.load %arg2[%c0_1, %c0_2] : memref<536x128xf32, #tpu.memory_space<vmem>>, vector<50x128xf32>
    %7 = arith.truncf %5 : vector<16x50xf32> to vector<16x50xbf16>
    %8 = arith.truncf %6 : vector<50x128xf32> to vector<50x128xbf16>
    %cst = arith.constant dense<0.000000e+00> : vector<16x128xf32>
    %9 = tpu.matmul %7, %8, %cst {dimension_numbers = #tpu.dot_dimension_numbers<[1], [0], [0], [1], [0, 0, 1, 1], [], []>} : vector<16x50xbf16>, vector<50x128xbf16>, vector<16x128xf32> -> vector<16x128xf32>
    %c88 = arith.constant 88 : index
    %c0_3 = arith.constant 0 : index
    %10 = vector.load %arg2[%c88, %c0_3] : memref<536x128xf32, #tpu.memory_space<vmem>>, vector<1x128xf32>
    %11 = vector.broadcast %10 : vector<1x128xf32> to vector<16x128xf32>
    %12 = arith.addf %9, %11 : vector<16x128xf32>
    %c56 = arith.constant 56 : index
    %c0_4 = arith.constant 0 : index
    %13 = vector.load %arg2[%c56, %c0_4] : memref<536x128xf32, #tpu.memory_space<vmem>>, vector<32x128xf32>
    %14 = arith.truncf %13 : vector<32x128xf32> to vector<32x128xbf16>
    %c128 = arith.constant 128 : index
    %c0_5 = arith.constant 0 : index
    %15 = vector.load %arg2[%c128, %c0_5] : memref<536x128xf32, #tpu.memory_space<vmem>>, vector<32x128xf32>
    %16 = arith.truncf %15 : vector<32x128xf32> to vector<32x128xbf16>
    %c96 = arith.constant 96 : index
    %c0_6 = arith.constant 0 : index
    %17 = vector.load %arg2[%c96, %c0_6] : memref<536x128xf32, #tpu.memory_space<vmem>>, vector<32x128xf32>
    %18 = arith.truncf %17 : vector<32x128xf32> to vector<32x128xbf16>
    %c160 = arith.constant 160 : index
    %c0_7 = arith.constant 0 : index
    %19 = vector.load %arg2[%c160, %c0_7] : memref<536x128xf32, #tpu.memory_space<vmem>>, vector<1x128xf32>
    %cst_8 = arith.constant 0.000000e+00 : f32
    %20 = vector.broadcast %cst_8 : f32 to vector<2x32xf32>
    %cst_9 = arith.constant 0.000000e+00 : f32
    %21 = vector.broadcast %cst_9 : f32 to vector<2x32xf32>
    %22 = vector.extract_strided_slice %12 {offsets = [0, 0], sizes = [2, 128], strides = [1, 1]} : vector<16x128xf32> to vector<2x128xf32>
    %23 = arith.negf %22 : vector<2x128xf32>
    %24 = math.exp %23 : vector<2x128xf32>
    %cst_10 = arith.constant 1.000000e+00 : f32
    %25 = vector.broadcast %cst_10 : f32 to vector<2x128xf32>
    %26 = arith.addf %25, %24 : vector<2x128xf32>
    %27 = arith.divf %25, %26 : vector<2x128xf32>
    %28 = math.tanh %22 : vector<2x128xf32>
    %29 = vector.extract_strided_slice %27 {offsets = [0, 0], sizes = [2, 32], strides = [1, 1]} : vector<2x128xf32> to vector<2x32xf32>
    %30 = vector.extract_strided_slice %27 {offsets = [0, 32], sizes = [2, 32], strides = [1, 1]} : vector<2x128xf32> to vector<2x32xf32>
    %31 = vector.extract_strided_slice %27 {offsets = [0, 96], sizes = [2, 32], strides = [1, 1]} : vector<2x128xf32> to vector<2x32xf32>
    %32 = vector.extract_strided_slice %28 {offsets = [0, 64], sizes = [2, 32], strides = [1, 1]} : vector<2x128xf32> to vector<2x32xf32>
    %33 = arith.mulf %30, %20 : vector<2x32xf32>
    %34 = arith.mulf %29, %32 : vector<2x32xf32>
    %35 = arith.addf %33, %34 : vector<2x32xf32>
    %36 = math.tanh %35 : vector<2x32xf32>
    %37 = arith.mulf %31, %36 : vector<2x32xf32>
    %38 = vector.extract_strided_slice %12 {offsets = [2, 0], sizes = [2, 128], strides = [1, 1]} : vector<16x128xf32> to vector<2x128xf32>
    %39 = arith.truncf %37 : vector<2x32xf32> to vector<2x32xbf16>
    %cst_11 = arith.constant dense<0.000000e+00> : vector<2x128xf32>
    %40 = tpu.matmul %39, %14, %cst_11 {dimension_numbers = #tpu.dot_dimension_numbers<[1], [0], [0], [1], [0, 0, 1, 1], [], []>} : vector<2x32xbf16>, vector<32x128xbf16>, vector<2x128xf32> -> vector<2x128xf32>
    %41 = arith.addf %38, %40 : vector<2x128xf32>
    %42 = arith.negf %41 : vector<2x128xf32>
    %43 = math.exp %42 : vector<2x128xf32>
    %cst_12 = arith.constant 1.000000e+00 : f32
    %44 = vector.broadcast %cst_12 : f32 to vector<2x128xf32>
    %45 = arith.addf %44, %43 : vector<2x128xf32>
    %46 = arith.divf %44, %45 : vector<2x128xf32>
    %47 = math.tanh %41 : vector<2x128xf32>
    %48 = vector.extract_strided_slice %46 {offsets = [0, 0], sizes = [2, 32], strides = [1, 1]} : vector<2x128xf32> to vector<2x32xf32>
    %49 = vector.extract_strided_slice %46 {offsets = [0, 32], sizes = [2, 32], strides = [1, 1]} : vector<2x128xf32> to vector<2x32xf32>
    %50 = vector.extract_strided_slice %46 {offsets = [0, 96], sizes = [2, 32], strides = [1, 1]} : vector<2x128xf32> to vector<2x32xf32>
    %51 = vector.extract_strided_slice %47 {offsets = [0, 64], sizes = [2, 32], strides = [1, 1]} : vector<2x128xf32> to vector<2x32xf32>
    %52 = arith.mulf %49, %35 : vector<2x32xf32>
    %53 = arith.mulf %48, %51 : vector<2x32xf32>
    %54 = arith.addf %52, %53 : vector<2x32xf32>
    %55 = math.tanh %54 : vector<2x32xf32>
    %56 = arith.mulf %50, %55 : vector<2x32xf32>
    %57 = arith.truncf %37 : vector<2x32xf32> to vector<2x32xbf16>
    %cst_13 = arith.constant dense<0.000000e+00> : vector<2x128xf32>
    %58 = tpu.matmul %57, %18, %cst_13 {dimension_numbers = #tpu.dot_dimension_numbers<[1], [0], [0], [1], [0, 0, 1, 1], [], []>} : vector<2x32xbf16>, vector<32x128xbf16>, vector<2x128xf32> -> vector<2x128xf32>
    %59 = vector.broadcast %19 : vector<1x128xf32> to vector<2x128xf32>
    %60 = arith.addf %58, %59 : vector<2x128xf32>
    %61 = arith.negf %60 : vector<2x128xf32>
    %62 = math.exp %61 : vector<2x128xf32>
    %cst_14 = arith.constant 1.000000e+00 : f32
    %63 = vector.broadcast %cst_14 : f32 to vector<2x128xf32>
    %64 = arith.addf %63, %62 : vector<2x128xf32>
    %65 = arith.divf %63, %64 : vector<2x128xf32>
    %66 = math.tanh %60 : vector<2x128xf32>
    %67 = vector.extract_strided_slice %65 {offsets = [0, 0], sizes = [2, 32], strides = [1, 1]} : vector<2x128xf32> to vector<2x32xf32>
    %68 = vector.extract_strided_slice %65 {offsets = [0, 32], sizes = [2, 32], strides = [1, 1]} : vector<2x128xf32> to vector<2x32xf32>
    %69 = vector.extract_strided_slice %65 {offsets = [0, 96], sizes = [2, 32], strides = [1, 1]} : vector<2x128xf32> to vector<2x32xf32>
    %70 = vector.extract_strided_slice %66 {offsets = [0, 64], sizes = [2, 32], strides = [1, 1]} : vector<2x128xf32> to vector<2x32xf32>
    %71 = arith.mulf %68, %21 : vector<2x32xf32>
    %72 = arith.mulf %67, %70 : vector<2x32xf32>
    %73 = arith.addf %71, %72 : vector<2x32xf32>
    %74 = math.tanh %73 : vector<2x32xf32>
    %75 = arith.mulf %69, %74 : vector<2x32xf32>
    %76 = vector.extract_strided_slice %12 {offsets = [4, 0], sizes = [2, 128], strides = [1, 1]} : vector<16x128xf32> to vector<2x128xf32>
    %77 = arith.truncf %56 : vector<2x32xf32> to vector<2x32xbf16>
    %cst_15 = arith.constant dense<0.000000e+00> : vector<2x128xf32>
    %78 = tpu.matmul %77, %14, %cst_15 {dimension_numbers = #tpu.dot_dimension_numbers<[1], [0], [0], [1], [0, 0, 1, 1], [], []>} : vector<2x32xbf16>, vector<32x128xbf16>, vector<2x128xf32> -> vector<2x128xf32>
    %79 = arith.addf %76, %78 : vector<2x128xf32>
    %80 = arith.negf %79 : vector<2x128xf32>
    %81 = math.exp %80 : vector<2x128xf32>
    %cst_16 = arith.constant 1.000000e+00 : f32
    %82 = vector.broadcast %cst_16 : f32 to vector<2x128xf32>
    %83 = arith.addf %82, %81 : vector<2x128xf32>
    %84 = arith.divf %82, %83 : vector<2x128xf32>
    %85 = math.tanh %79 : vector<2x128xf32>
    %86 = vector.extract_strided_slice %84 {offsets = [0, 0], sizes = [2, 32], strides = [1, 1]} : vector<2x128xf32> to vector<2x32xf32>
    %87 = vector.extract_strided_slice %84 {offsets = [0, 32], sizes = [2, 32], strides = [1, 1]} : vector<2x128xf32> to vector<2x32xf32>
    %88 = vector.extract_strided_slice %84 {offsets = [0, 96], sizes = [2, 32], strides = [1, 1]} : vector<2x128xf32> to vector<2x32xf32>
    %89 = vector.extract_strided_slice %85 {offsets = [0, 64], sizes = [2, 32], strides = [1, 1]} : vector<2x128xf32> to vector<2x32xf32>
    %90 = arith.mulf %87, %54 : vector<2x32xf32>
    %91 = arith.mulf %86, %89 : vector<2x32xf32>
    %92 = arith.addf %90, %91 : vector<2x32xf32>
    %93 = math.tanh %92 : vector<2x32xf32>
    %94 = arith.mulf %88, %93 : vector<2x32xf32>
    %95 = arith.truncf %56 : vector<2x32xf32> to vector<2x32xbf16>
    %cst_17 = arith.constant dense<0.000000e+00> : vector<2x128xf32>
    %96 = tpu.matmul %95, %18, %cst_17 {dimension_numbers = #tpu.dot_dimension_numbers<[1], [0], [0], [1], [0, 0, 1, 1], [], []>} : vector<2x32xbf16>, vector<32x128xbf16>, vector<2x128xf32> -> vector<2x128xf32>
    %97 = vector.broadcast %19 : vector<1x128xf32> to vector<2x128xf32>
    %98 = arith.addf %96, %97 : vector<2x128xf32>
    %99 = arith.truncf %75 : vector<2x32xf32> to vector<2x32xbf16>
    %cst_18 = arith.constant dense<0.000000e+00> : vector<2x128xf32>
    %100 = tpu.matmul %99, %16, %cst_18 {dimension_numbers = #tpu.dot_dimension_numbers<[1], [0], [0], [1], [0, 0, 1, 1], [], []>} : vector<2x32xbf16>, vector<32x128xbf16>, vector<2x128xf32> -> vector<2x128xf32>
    %101 = arith.addf %98, %100 : vector<2x128xf32>
    %102 = arith.negf %101 : vector<2x128xf32>
    %103 = math.exp %102 : vector<2x128xf32>
    %cst_19 = arith.constant 1.000000e+00 : f32
    %104 = vector.broadcast %cst_19 : f32 to vector<2x128xf32>
    %105 = arith.addf %104, %103 : vector<2x128xf32>
    %106 = arith.divf %104, %105 : vector<2x128xf32>
    %107 = math.tanh %101 : vector<2x128xf32>
    %108 = vector.extract_strided_slice %106 {offsets = [0, 0], sizes = [2, 32], strides = [1, 1]} : vector<2x128xf32> to vector<2x32xf32>
    %109 = vector.extract_strided_slice %106 {offsets = [0, 32], sizes = [2, 32], strides = [1, 1]} : vector<2x128xf32> to vector<2x32xf32>
    %110 = vector.extract_strided_slice %106 {offsets = [0, 96], sizes = [2, 32], strides = [1, 1]} : vector<2x128xf32> to vector<2x32xf32>
    %111 = vector.extract_strided_slice %107 {offsets = [0, 64], sizes = [2, 32], strides = [1, 1]} : vector<2x128xf32> to vector<2x32xf32>
    %112 = arith.mulf %109, %73 : vector<2x32xf32>
    %113 = arith.mulf %108, %111 : vector<2x32xf32>
    %114 = arith.addf %112, %113 : vector<2x32xf32>
    %115 = math.tanh %114 : vector<2x32xf32>
    %116 = arith.mulf %110, %115 : vector<2x32xf32>
    %117 = vector.extract_strided_slice %12 {offsets = [6, 0], sizes = [2, 128], strides = [1, 1]} : vector<16x128xf32> to vector<2x128xf32>
    %118 = arith.truncf %94 : vector<2x32xf32> to vector<2x32xbf16>
    %cst_20 = arith.constant dense<0.000000e+00> : vector<2x128xf32>
    %119 = tpu.matmul %118, %14, %cst_20 {dimension_numbers = #tpu.dot_dimension_numbers<[1], [0], [0], [1], [0, 0, 1, 1], [], []>} : vector<2x32xbf16>, vector<32x128xbf16>, vector<2x128xf32> -> vector<2x128xf32>
    %120 = arith.addf %117, %119 : vector<2x128xf32>
    %121 = arith.negf %120 : vector<2x128xf32>
    %122 = math.exp %121 : vector<2x128xf32>
    %cst_21 = arith.constant 1.000000e+00 : f32
    %123 = vector.broadcast %cst_21 : f32 to vector<2x128xf32>
    %124 = arith.addf %123, %122 : vector<2x128xf32>
    %125 = arith.divf %123, %124 : vector<2x128xf32>
    %126 = math.tanh %120 : vector<2x128xf32>
    %127 = vector.extract_strided_slice %125 {offsets = [0, 0], sizes = [2, 32], strides = [1, 1]} : vector<2x128xf32> to vector<2x32xf32>
    %128 = vector.extract_strided_slice %125 {offsets = [0, 32], sizes = [2, 32], strides = [1, 1]} : vector<2x128xf32> to vector<2x32xf32>
    %129 = vector.extract_strided_slice %125 {offsets = [0, 96], sizes = [2, 32], strides = [1, 1]} : vector<2x128xf32> to vector<2x32xf32>
    %130 = vector.extract_strided_slice %126 {offsets = [0, 64], sizes = [2, 32], strides = [1, 1]} : vector<2x128xf32> to vector<2x32xf32>
    %131 = arith.mulf %128, %92 : vector<2x32xf32>
    %132 = arith.mulf %127, %130 : vector<2x32xf32>
    %133 = arith.addf %131, %132 : vector<2x32xf32>
    %134 = math.tanh %133 : vector<2x32xf32>
    %135 = arith.mulf %129, %134 : vector<2x32xf32>
    %136 = arith.truncf %94 : vector<2x32xf32> to vector<2x32xbf16>
    %cst_22 = arith.constant dense<0.000000e+00> : vector<2x128xf32>
    %137 = tpu.matmul %136, %18, %cst_22 {dimension_numbers = #tpu.dot_dimension_numbers<[1], [0], [0], [1], [0, 0, 1, 1], [], []>} : vector<2x32xbf16>, vector<32x128xbf16>, vector<2x128xf32> -> vector<2x128xf32>
    %138 = vector.broadcast %19 : vector<1x128xf32> to vector<2x128xf32>
    %139 = arith.addf %137, %138 : vector<2x128xf32>
    %140 = arith.truncf %116 : vector<2x32xf32> to vector<2x32xbf16>
    %cst_23 = arith.constant dense<0.000000e+00> : vector<2x128xf32>
    %141 = tpu.matmul %140, %16, %cst_23 {dimension_numbers = #tpu.dot_dimension_numbers<[1], [0], [0], [1], [0, 0, 1, 1], [], []>} : vector<2x32xbf16>, vector<32x128xbf16>, vector<2x128xf32> -> vector<2x128xf32>
    %142 = arith.addf %139, %141 : vector<2x128xf32>
    %143 = arith.negf %142 : vector<2x128xf32>
    %144 = math.exp %143 : vector<2x128xf32>
    %cst_24 = arith.constant 1.000000e+00 : f32
    %145 = vector.broadcast %cst_24 : f32 to vector<2x128xf32>
    %146 = arith.addf %145, %144 : vector<2x128xf32>
    %147 = arith.divf %145, %146 : vector<2x128xf32>
    %148 = math.tanh %142 : vector<2x128xf32>
    %149 = vector.extract_strided_slice %147 {offsets = [0, 0], sizes = [2, 32], strides = [1, 1]} : vector<2x128xf32> to vector<2x32xf32>
    %150 = vector.extract_strided_slice %147 {offsets = [0, 32], sizes = [2, 32], strides = [1, 1]} : vector<2x128xf32> to vector<2x32xf32>
    %151 = vector.extract_strided_slice %147 {offsets = [0, 96], sizes = [2, 32], strides = [1, 1]} : vector<2x128xf32> to vector<2x32xf32>
    %152 = vector.extract_strided_slice %148 {offsets = [0, 64], sizes = [2, 32], strides = [1, 1]} : vector<2x128xf32> to vector<2x32xf32>
    %153 = arith.mulf %150, %114 : vector<2x32xf32>
    %154 = arith.mulf %149, %152 : vector<2x32xf32>
    %155 = arith.addf %153, %154 : vector<2x32xf32>
    %156 = math.tanh %155 : vector<2x32xf32>
    %157 = arith.mulf %151, %156 : vector<2x32xf32>
    %158 = vector.extract_strided_slice %12 {offsets = [8, 0], sizes = [2, 128], strides = [1, 1]} : vector<16x128xf32> to vector<2x128xf32>
    %159 = arith.truncf %135 : vector<2x32xf32> to vector<2x32xbf16>
    %cst_25 = arith.constant dense<0.000000e+00> : vector<2x128xf32>
    %160 = tpu.matmul %159, %14, %cst_25 {dimension_numbers = #tpu.dot_dimension_numbers<[1], [0], [0], [1], [0, 0, 1, 1], [], []>} : vector<2x32xbf16>, vector<32x128xbf16>, vector<2x128xf32> -> vector<2x128xf32>
    %161 = arith.addf %158, %160 : vector<2x128xf32>
    %162 = arith.negf %161 : vector<2x128xf32>
    %163 = math.exp %162 : vector<2x128xf32>
    %cst_26 = arith.constant 1.000000e+00 : f32
    %164 = vector.broadcast %cst_26 : f32 to vector<2x128xf32>
    %165 = arith.addf %164, %163 : vector<2x128xf32>
    %166 = arith.divf %164, %165 : vector<2x128xf32>
    %167 = math.tanh %161 : vector<2x128xf32>
    %168 = vector.extract_strided_slice %166 {offsets = [0, 0], sizes = [2, 32], strides = [1, 1]} : vector<2x128xf32> to vector<2x32xf32>
    %169 = vector.extract_strided_slice %166 {offsets = [0, 32], sizes = [2, 32], strides = [1, 1]} : vector<2x128xf32> to vector<2x32xf32>
    %170 = vector.extract_strided_slice %166 {offsets = [0, 96], sizes = [2, 32], strides = [1, 1]} : vector<2x128xf32> to vector<2x32xf32>
    %171 = vector.extract_strided_slice %167 {offsets = [0, 64], sizes = [2, 32], strides = [1, 1]} : vector<2x128xf32> to vector<2x32xf32>
    %172 = arith.mulf %169, %133 : vector<2x32xf32>
    %173 = arith.mulf %168, %171 : vector<2x32xf32>
    %174 = arith.addf %172, %173 : vector<2x32xf32>
    %175 = math.tanh %174 : vector<2x32xf32>
    %176 = arith.mulf %170, %175 : vector<2x32xf32>
    %177 = arith.truncf %135 : vector<2x32xf32> to vector<2x32xbf16>
    %cst_27 = arith.constant dense<0.000000e+00> : vector<2x128xf32>
    %178 = tpu.matmul %177, %18, %cst_27 {dimension_numbers = #tpu.dot_dimension_numbers<[1], [0], [0], [1], [0, 0, 1, 1], [], []>} : vector<2x32xbf16>, vector<32x128xbf16>, vector<2x128xf32> -> vector<2x128xf32>
    %179 = vector.broadcast %19 : vector<1x128xf32> to vector<2x128xf32>
    %180 = arith.addf %178, %179 : vector<2x128xf32>
    %181 = arith.truncf %157 : vector<2x32xf32> to vector<2x32xbf16>
    %cst_28 = arith.constant dense<0.000000e+00> : vector<2x128xf32>
    %182 = tpu.matmul %181, %16, %cst_28 {dimension_numbers = #tpu.dot_dimension_numbers<[1], [0], [0], [1], [0, 0, 1, 1], [], []>} : vector<2x32xbf16>, vector<32x128xbf16>, vector<2x128xf32> -> vector<2x128xf32>
    %183 = arith.addf %180, %182 : vector<2x128xf32>
    %184 = arith.negf %183 : vector<2x128xf32>
    %185 = math.exp %184 : vector<2x128xf32>
    %cst_29 = arith.constant 1.000000e+00 : f32
    %186 = vector.broadcast %cst_29 : f32 to vector<2x128xf32>
    %187 = arith.addf %186, %185 : vector<2x128xf32>
    %188 = arith.divf %186, %187 : vector<2x128xf32>
    %189 = math.tanh %183 : vector<2x128xf32>
    %190 = vector.extract_strided_slice %188 {offsets = [0, 0], sizes = [2, 32], strides = [1, 1]} : vector<2x128xf32> to vector<2x32xf32>
    %191 = vector.extract_strided_slice %188 {offsets = [0, 32], sizes = [2, 32], strides = [1, 1]} : vector<2x128xf32> to vector<2x32xf32>
    %192 = vector.extract_strided_slice %188 {offsets = [0, 96], sizes = [2, 32], strides = [1, 1]} : vector<2x128xf32> to vector<2x32xf32>
    %193 = vector.extract_strided_slice %189 {offsets = [0, 64], sizes = [2, 32], strides = [1, 1]} : vector<2x128xf32> to vector<2x32xf32>
    %194 = arith.mulf %191, %155 : vector<2x32xf32>
    %195 = arith.mulf %190, %193 : vector<2x32xf32>
    %196 = arith.addf %194, %195 : vector<2x32xf32>
    %197 = math.tanh %196 : vector<2x32xf32>
    %198 = arith.mulf %192, %197 : vector<2x32xf32>
    %199 = vector.extract_strided_slice %12 {offsets = [10, 0], sizes = [2, 128], strides = [1, 1]} : vector<16x128xf32> to vector<2x128xf32>
    %200 = arith.truncf %176 : vector<2x32xf32> to vector<2x32xbf16>
    %cst_30 = arith.constant dense<0.000000e+00> : vector<2x128xf32>
    %201 = tpu.matmul %200, %14, %cst_30 {dimension_numbers = #tpu.dot_dimension_numbers<[1], [0], [0], [1], [0, 0, 1, 1], [], []>} : vector<2x32xbf16>, vector<32x128xbf16>, vector<2x128xf32> -> vector<2x128xf32>
    %202 = arith.addf %199, %201 : vector<2x128xf32>
    %203 = arith.negf %202 : vector<2x128xf32>
    %204 = math.exp %203 : vector<2x128xf32>
    %cst_31 = arith.constant 1.000000e+00 : f32
    %205 = vector.broadcast %cst_31 : f32 to vector<2x128xf32>
    %206 = arith.addf %205, %204 : vector<2x128xf32>
    %207 = arith.divf %205, %206 : vector<2x128xf32>
    %208 = math.tanh %202 : vector<2x128xf32>
    %209 = vector.extract_strided_slice %207 {offsets = [0, 0], sizes = [2, 32], strides = [1, 1]} : vector<2x128xf32> to vector<2x32xf32>
    %210 = vector.extract_strided_slice %207 {offsets = [0, 32], sizes = [2, 32], strides = [1, 1]} : vector<2x128xf32> to vector<2x32xf32>
    %211 = vector.extract_strided_slice %207 {offsets = [0, 96], sizes = [2, 32], strides = [1, 1]} : vector<2x128xf32> to vector<2x32xf32>
    %212 = vector.extract_strided_slice %208 {offsets = [0, 64], sizes = [2, 32], strides = [1, 1]} : vector<2x128xf32> to vector<2x32xf32>
    %213 = arith.mulf %210, %174 : vector<2x32xf32>
    %214 = arith.mulf %209, %212 : vector<2x32xf32>
    %215 = arith.addf %213, %214 : vector<2x32xf32>
    %216 = math.tanh %215 : vector<2x32xf32>
    %217 = arith.mulf %211, %216 : vector<2x32xf32>
    %218 = arith.truncf %176 : vector<2x32xf32> to vector<2x32xbf16>
    %cst_32 = arith.constant dense<0.000000e+00> : vector<2x128xf32>
    %219 = tpu.matmul %218, %18, %cst_32 {dimension_numbers = #tpu.dot_dimension_numbers<[1], [0], [0], [1], [0, 0, 1, 1], [], []>} : vector<2x32xbf16>, vector<32x128xbf16>, vector<2x128xf32> -> vector<2x128xf32>
    %220 = vector.broadcast %19 : vector<1x128xf32> to vector<2x128xf32>
    %221 = arith.addf %219, %220 : vector<2x128xf32>
    %222 = arith.truncf %198 : vector<2x32xf32> to vector<2x32xbf16>
    %cst_33 = arith.constant dense<0.000000e+00> : vector<2x128xf32>
    %223 = tpu.matmul %222, %16, %cst_33 {dimension_numbers = #tpu.dot_dimension_numbers<[1], [0], [0], [1], [0, 0, 1, 1], [], []>} : vector<2x32xbf16>, vector<32x128xbf16>, vector<2x128xf32> -> vector<2x128xf32>
    %224 = arith.addf %221, %223 : vector<2x128xf32>
    %225 = arith.negf %224 : vector<2x128xf32>
    %226 = math.exp %225 : vector<2x128xf32>
    %cst_34 = arith.constant 1.000000e+00 : f32
    %227 = vector.broadcast %cst_34 : f32 to vector<2x128xf32>
    %228 = arith.addf %227, %226 : vector<2x128xf32>
    %229 = arith.divf %227, %228 : vector<2x128xf32>
    %230 = math.tanh %224 : vector<2x128xf32>
    %231 = vector.extract_strided_slice %229 {offsets = [0, 0], sizes = [2, 32], strides = [1, 1]} : vector<2x128xf32> to vector<2x32xf32>
    %232 = vector.extract_strided_slice %229 {offsets = [0, 32], sizes = [2, 32], strides = [1, 1]} : vector<2x128xf32> to vector<2x32xf32>
    %233 = vector.extract_strided_slice %229 {offsets = [0, 96], sizes = [2, 32], strides = [1, 1]} : vector<2x128xf32> to vector<2x32xf32>
    %234 = vector.extract_strided_slice %230 {offsets = [0, 64], sizes = [2, 32], strides = [1, 1]} : vector<2x128xf32> to vector<2x32xf32>
    %235 = arith.mulf %232, %196 : vector<2x32xf32>
    %236 = arith.mulf %231, %234 : vector<2x32xf32>
    %237 = arith.addf %235, %236 : vector<2x32xf32>
    %238 = math.tanh %237 : vector<2x32xf32>
    %239 = arith.mulf %233, %238 : vector<2x32xf32>
    %240 = vector.extract_strided_slice %12 {offsets = [12, 0], sizes = [2, 128], strides = [1, 1]} : vector<16x128xf32> to vector<2x128xf32>
    %241 = arith.truncf %217 : vector<2x32xf32> to vector<2x32xbf16>
    %cst_35 = arith.constant dense<0.000000e+00> : vector<2x128xf32>
    %242 = tpu.matmul %241, %14, %cst_35 {dimension_numbers = #tpu.dot_dimension_numbers<[1], [0], [0], [1], [0, 0, 1, 1], [], []>} : vector<2x32xbf16>, vector<32x128xbf16>, vector<2x128xf32> -> vector<2x128xf32>
    %243 = arith.addf %240, %242 : vector<2x128xf32>
    %244 = arith.negf %243 : vector<2x128xf32>
    %245 = math.exp %244 : vector<2x128xf32>
    %cst_36 = arith.constant 1.000000e+00 : f32
    %246 = vector.broadcast %cst_36 : f32 to vector<2x128xf32>
    %247 = arith.addf %246, %245 : vector<2x128xf32>
    %248 = arith.divf %246, %247 : vector<2x128xf32>
    %249 = math.tanh %243 : vector<2x128xf32>
    %250 = vector.extract_strided_slice %248 {offsets = [0, 0], sizes = [2, 32], strides = [1, 1]} : vector<2x128xf32> to vector<2x32xf32>
    %251 = vector.extract_strided_slice %248 {offsets = [0, 32], sizes = [2, 32], strides = [1, 1]} : vector<2x128xf32> to vector<2x32xf32>
    %252 = vector.extract_strided_slice %248 {offsets = [0, 96], sizes = [2, 32], strides = [1, 1]} : vector<2x128xf32> to vector<2x32xf32>
    %253 = vector.extract_strided_slice %249 {offsets = [0, 64], sizes = [2, 32], strides = [1, 1]} : vector<2x128xf32> to vector<2x32xf32>
    %254 = arith.mulf %251, %215 : vector<2x32xf32>
    %255 = arith.mulf %250, %253 : vector<2x32xf32>
    %256 = arith.addf %254, %255 : vector<2x32xf32>
    %257 = math.tanh %256 : vector<2x32xf32>
    %258 = arith.mulf %252, %257 : vector<2x32xf32>
    %259 = arith.truncf %217 : vector<2x32xf32> to vector<2x32xbf16>
    %cst_37 = arith.constant dense<0.000000e+00> : vector<2x128xf32>
    %260 = tpu.matmul %259, %18, %cst_37 {dimension_numbers = #tpu.dot_dimension_numbers<[1], [0], [0], [1], [0, 0, 1, 1], [], []>} : vector<2x32xbf16>, vector<32x128xbf16>, vector<2x128xf32> -> vector<2x128xf32>
    %261 = vector.broadcast %19 : vector<1x128xf32> to vector<2x128xf32>
    %262 = arith.addf %260, %261 : vector<2x128xf32>
    %263 = arith.truncf %239 : vector<2x32xf32> to vector<2x32xbf16>
    %cst_38 = arith.constant dense<0.000000e+00> : vector<2x128xf32>
    %264 = tpu.matmul %263, %16, %cst_38 {dimension_numbers = #tpu.dot_dimension_numbers<[1], [0], [0], [1], [0, 0, 1, 1], [], []>} : vector<2x32xbf16>, vector<32x128xbf16>, vector<2x128xf32> -> vector<2x128xf32>
    %265 = arith.addf %262, %264 : vector<2x128xf32>
    %266 = arith.negf %265 : vector<2x128xf32>
    %267 = math.exp %266 : vector<2x128xf32>
    %cst_39 = arith.constant 1.000000e+00 : f32
    %268 = vector.broadcast %cst_39 : f32 to vector<2x128xf32>
    %269 = arith.addf %268, %267 : vector<2x128xf32>
    %270 = arith.divf %268, %269 : vector<2x128xf32>
    %271 = math.tanh %265 : vector<2x128xf32>
    %272 = vector.extract_strided_slice %270 {offsets = [0, 0], sizes = [2, 32], strides = [1, 1]} : vector<2x128xf32> to vector<2x32xf32>
    %273 = vector.extract_strided_slice %270 {offsets = [0, 32], sizes = [2, 32], strides = [1, 1]} : vector<2x128xf32> to vector<2x32xf32>
    %274 = vector.extract_strided_slice %270 {offsets = [0, 96], sizes = [2, 32], strides = [1, 1]} : vector<2x128xf32> to vector<2x32xf32>
    %275 = vector.extract_strided_slice %271 {offsets = [0, 64], sizes = [2, 32], strides = [1, 1]} : vector<2x128xf32> to vector<2x32xf32>
    %276 = arith.mulf %273, %237 : vector<2x32xf32>
    %277 = arith.mulf %272, %275 : vector<2x32xf32>
    %278 = arith.addf %276, %277 : vector<2x32xf32>
    %279 = math.tanh %278 : vector<2x32xf32>
    %280 = arith.mulf %274, %279 : vector<2x32xf32>
    %281 = vector.extract_strided_slice %12 {offsets = [14, 0], sizes = [2, 128], strides = [1, 1]} : vector<16x128xf32> to vector<2x128xf32>
    %282 = arith.truncf %258 : vector<2x32xf32> to vector<2x32xbf16>
    %cst_40 = arith.constant dense<0.000000e+00> : vector<2x128xf32>
    %283 = tpu.matmul %282, %14, %cst_40 {dimension_numbers = #tpu.dot_dimension_numbers<[1], [0], [0], [1], [0, 0, 1, 1], [], []>} : vector<2x32xbf16>, vector<32x128xbf16>, vector<2x128xf32> -> vector<2x128xf32>
    %284 = arith.addf %281, %283 : vector<2x128xf32>
    %285 = arith.negf %284 : vector<2x128xf32>
    %286 = math.exp %285 : vector<2x128xf32>
    %cst_41 = arith.constant 1.000000e+00 : f32
    %287 = vector.broadcast %cst_41 : f32 to vector<2x128xf32>
    %288 = arith.addf %287, %286 : vector<2x128xf32>
    %289 = arith.divf %287, %288 : vector<2x128xf32>
    %290 = math.tanh %284 : vector<2x128xf32>
    %291 = vector.extract_strided_slice %289 {offsets = [0, 0], sizes = [2, 32], strides = [1, 1]} : vector<2x128xf32> to vector<2x32xf32>
    %292 = vector.extract_strided_slice %289 {offsets = [0, 32], sizes = [2, 32], strides = [1, 1]} : vector<2x128xf32> to vector<2x32xf32>
    %293 = vector.extract_strided_slice %289 {offsets = [0, 96], sizes = [2, 32], strides = [1, 1]} : vector<2x128xf32> to vector<2x32xf32>
    %294 = vector.extract_strided_slice %290 {offsets = [0, 64], sizes = [2, 32], strides = [1, 1]} : vector<2x128xf32> to vector<2x32xf32>
    %295 = arith.mulf %292, %256 : vector<2x32xf32>
    %296 = arith.mulf %291, %294 : vector<2x32xf32>
    %297 = arith.addf %295, %296 : vector<2x32xf32>
    %298 = math.tanh %297 : vector<2x32xf32>
    %299 = arith.mulf %293, %298 : vector<2x32xf32>
    %300 = arith.truncf %258 : vector<2x32xf32> to vector<2x32xbf16>
    %cst_42 = arith.constant dense<0.000000e+00> : vector<2x128xf32>
    %301 = tpu.matmul %300, %18, %cst_42 {dimension_numbers = #tpu.dot_dimension_numbers<[1], [0], [0], [1], [0, 0, 1, 1], [], []>} : vector<2x32xbf16>, vector<32x128xbf16>, vector<2x128xf32> -> vector<2x128xf32>
    %302 = vector.broadcast %19 : vector<1x128xf32> to vector<2x128xf32>
    %303 = arith.addf %301, %302 : vector<2x128xf32>
    %304 = arith.truncf %280 : vector<2x32xf32> to vector<2x32xbf16>
    %cst_43 = arith.constant dense<0.000000e+00> : vector<2x128xf32>
    %305 = tpu.matmul %304, %16, %cst_43 {dimension_numbers = #tpu.dot_dimension_numbers<[1], [0], [0], [1], [0, 0, 1, 1], [], []>} : vector<2x32xbf16>, vector<32x128xbf16>, vector<2x128xf32> -> vector<2x128xf32>
    %306 = arith.addf %303, %305 : vector<2x128xf32>
    %307 = arith.negf %306 : vector<2x128xf32>
    %308 = math.exp %307 : vector<2x128xf32>
    %cst_44 = arith.constant 1.000000e+00 : f32
    %309 = vector.broadcast %cst_44 : f32 to vector<2x128xf32>
    %310 = arith.addf %309, %308 : vector<2x128xf32>
    %311 = arith.divf %309, %310 : vector<2x128xf32>
    %312 = math.tanh %306 : vector<2x128xf32>
    %313 = vector.extract_strided_slice %311 {offsets = [0, 0], sizes = [2, 32], strides = [1, 1]} : vector<2x128xf32> to vector<2x32xf32>
    %314 = vector.extract_strided_slice %311 {offsets = [0, 32], sizes = [2, 32], strides = [1, 1]} : vector<2x128xf32> to vector<2x32xf32>
    %315 = vector.extract_strided_slice %311 {offsets = [0, 96], sizes = [2, 32], strides = [1, 1]} : vector<2x128xf32> to vector<2x32xf32>
    %316 = vector.extract_strided_slice %312 {offsets = [0, 64], sizes = [2, 32], strides = [1, 1]} : vector<2x128xf32> to vector<2x32xf32>
    %317 = arith.mulf %314, %278 : vector<2x32xf32>
    %318 = arith.mulf %313, %316 : vector<2x32xf32>
    %319 = arith.addf %317, %318 : vector<2x32xf32>
    %320 = math.tanh %319 : vector<2x32xf32>
    %321 = arith.mulf %315, %320 : vector<2x32xf32>
    %322 = arith.truncf %299 : vector<2x32xf32> to vector<2x32xbf16>
    %cst_45 = arith.constant dense<0.000000e+00> : vector<2x128xf32>
    %323 = tpu.matmul %322, %18, %cst_45 {dimension_numbers = #tpu.dot_dimension_numbers<[1], [0], [0], [1], [0, 0, 1, 1], [], []>} : vector<2x32xbf16>, vector<32x128xbf16>, vector<2x128xf32> -> vector<2x128xf32>
    %324 = vector.broadcast %19 : vector<1x128xf32> to vector<2x128xf32>
    %325 = arith.addf %323, %324 : vector<2x128xf32>
    %326 = arith.truncf %321 : vector<2x32xf32> to vector<2x32xbf16>
    %cst_46 = arith.constant dense<0.000000e+00> : vector<2x128xf32>
    %327 = tpu.matmul %326, %16, %cst_46 {dimension_numbers = #tpu.dot_dimension_numbers<[1], [0], [0], [1], [0, 0, 1, 1], [], []>} : vector<2x32xbf16>, vector<32x128xbf16>, vector<2x128xf32> -> vector<2x128xf32>
    %328 = arith.addf %325, %327 : vector<2x128xf32>
    %329 = arith.negf %328 : vector<2x128xf32>
    %330 = math.exp %329 : vector<2x128xf32>
    %cst_47 = arith.constant 1.000000e+00 : f32
    %331 = vector.broadcast %cst_47 : f32 to vector<2x128xf32>
    %332 = arith.addf %331, %330 : vector<2x128xf32>
    %333 = arith.divf %331, %332 : vector<2x128xf32>
    %334 = math.tanh %328 : vector<2x128xf32>
    %335 = vector.extract_strided_slice %333 {offsets = [0, 0], sizes = [2, 32], strides = [1, 1]} : vector<2x128xf32> to vector<2x32xf32>
    %336 = vector.extract_strided_slice %333 {offsets = [0, 32], sizes = [2, 32], strides = [1, 1]} : vector<2x128xf32> to vector<2x32xf32>
    %337 = vector.extract_strided_slice %333 {offsets = [0, 96], sizes = [2, 32], strides = [1, 1]} : vector<2x128xf32> to vector<2x32xf32>
    %338 = vector.extract_strided_slice %334 {offsets = [0, 64], sizes = [2, 32], strides = [1, 1]} : vector<2x128xf32> to vector<2x32xf32>
    %339 = arith.mulf %336, %319 : vector<2x32xf32>
    %340 = arith.mulf %335, %338 : vector<2x32xf32>
    %341 = arith.addf %339, %340 : vector<2x32xf32>
    %342 = math.tanh %341 : vector<2x32xf32>
    %343 = arith.mulf %337, %342 : vector<2x32xf32>
    %c0_48 = arith.constant 0 : index
    %c0_49 = arith.constant 0 : index
    %344 = vector.load %arg1[%c0_48, %c0_49] : memref<2x10xf32, #tpu.memory_space<vmem>>, vector<2x10xf32>
    %c168 = arith.constant 168 : index
    %c0_50 = arith.constant 0 : index
    %345 = vector.load %arg2[%c168, %c0_50] : memref<536x128xf32, #tpu.memory_space<vmem>>, vector<10x128xf32>
    %346 = arith.truncf %344 : vector<2x10xf32> to vector<2x10xbf16>
    %347 = arith.truncf %345 : vector<10x128xf32> to vector<10x128xbf16>
    %cst_51 = arith.constant dense<0.000000e+00> : vector<2x128xf32>
    %348 = tpu.matmul %346, %347, %cst_51 {dimension_numbers = #tpu.dot_dimension_numbers<[1], [0], [0], [1], [0, 0, 1, 1], [], []>} : vector<2x10xbf16>, vector<10x128xbf16>, vector<2x128xf32> -> vector<2x128xf32>
    %c184 = arith.constant 184 : index
    %c0_52 = arith.constant 0 : index
    %349 = vector.load %arg2[%c184, %c0_52] : memref<536x128xf32, #tpu.memory_space<vmem>>, vector<1x128xf32>
    %350 = vector.broadcast %349 : vector<1x128xf32> to vector<2x128xf32>
    %351 = arith.addf %348, %350 : vector<2x128xf32>
    %352 = arith.negf %351 : vector<2x128xf32>
    %353 = math.exp %352 : vector<2x128xf32>
    %cst_53 = arith.constant 1.000000e+00 : f32
    %354 = vector.broadcast %cst_53 : f32 to vector<2x128xf32>
    %355 = arith.addf %354, %353 : vector<2x128xf32>
    %356 = arith.divf %354, %355 : vector<2x128xf32>
    %357 = math.tanh %351 : vector<2x128xf32>
    %358 = vector.extract_strided_slice %356 {offsets = [0, 0], sizes = [2, 32], strides = [1, 1]} : vector<2x128xf32> to vector<2x32xf32>
    %359 = vector.extract_strided_slice %356 {offsets = [0, 96], sizes = [2, 32], strides = [1, 1]} : vector<2x128xf32> to vector<2x32xf32>
    %360 = vector.extract_strided_slice %357 {offsets = [0, 64], sizes = [2, 32], strides = [1, 1]} : vector<2x128xf32> to vector<2x32xf32>
    %361 = arith.mulf %358, %360 : vector<2x32xf32>
    %362 = math.tanh %361 : vector<2x32xf32>
    %363 = arith.mulf %359, %362 : vector<2x32xf32>
    %c192 = arith.constant 192 : index
    %c0_54 = arith.constant 0 : index
    %364 = vector.load %arg2[%c192, %c0_54] : memref<536x128xf32, #tpu.memory_space<vmem>>, vector<32x128xf32>
    %365 = arith.truncf %363 : vector<2x32xf32> to vector<2x32xbf16>
    %366 = arith.truncf %364 : vector<32x128xf32> to vector<32x128xbf16>
    %cst_55 = arith.constant dense<0.000000e+00> : vector<2x128xf32>
    %367 = tpu.matmul %365, %366, %cst_55 {dimension_numbers = #tpu.dot_dimension_numbers<[1], [0], [0], [1], [0, 0, 1, 1], [], []>} : vector<2x32xbf16>, vector<32x128xbf16>, vector<2x128xf32> -> vector<2x128xf32>
    %c224 = arith.constant 224 : index
    %c0_56 = arith.constant 0 : index
    %368 = vector.load %arg2[%c224, %c0_56] : memref<536x128xf32, #tpu.memory_space<vmem>>, vector<1x128xf32>
    %369 = vector.broadcast %368 : vector<1x128xf32> to vector<2x128xf32>
    %370 = arith.addf %367, %369 : vector<2x128xf32>
    %371 = arith.negf %370 : vector<2x128xf32>
    %372 = math.exp %371 : vector<2x128xf32>
    %cst_57 = arith.constant 1.000000e+00 : f32
    %373 = vector.broadcast %cst_57 : f32 to vector<2x128xf32>
    %374 = arith.addf %373, %372 : vector<2x128xf32>
    %375 = arith.divf %373, %374 : vector<2x128xf32>
    %376 = math.tanh %370 : vector<2x128xf32>
    %377 = vector.extract_strided_slice %375 {offsets = [0, 0], sizes = [2, 32], strides = [1, 1]} : vector<2x128xf32> to vector<2x32xf32>
    %378 = vector.extract_strided_slice %375 {offsets = [0, 96], sizes = [2, 32], strides = [1, 1]} : vector<2x128xf32> to vector<2x32xf32>
    %379 = vector.extract_strided_slice %376 {offsets = [0, 64], sizes = [2, 32], strides = [1, 1]} : vector<2x128xf32> to vector<2x32xf32>
    %380 = arith.mulf %377, %379 : vector<2x32xf32>
    %381 = math.tanh %380 : vector<2x32xf32>
    %382 = arith.mulf %378, %381 : vector<2x32xf32>
    %c16 = arith.constant 16 : index
    %c0_58 = arith.constant 0 : index
    %383 = vector.load %arg0[%c16, %c0_58] : memref<40x1xi32, #tpu.memory_space<vmem>>, vector<20x1xi32>
    %384 = tpu.iota {dimensions = array<i32: 1>} : vector<20x40xi32>
    %385 = vector.broadcast %383 : vector<20x1xi32> to vector<20x40xi32>
    %386 = arith.cmpi eq, %385, %384 : vector<20x40xi32>
    %387 = arith.extui %386 : vector<20x40xi1> to vector<20x40xi32>
    %388 = arith.sitofp %387 : vector<20x40xi32> to vector<20x40xf32>
    %c512 = arith.constant 512 : index
    %c0_59 = arith.constant 0 : index
    %389 = vector.load %arg2[%c512, %c0_59] : memref<536x128xf32, #tpu.memory_space<vmem>>, vector<16x2xf32>
    %cst_60 = arith.constant 0.000000e+00 : f32
    %390 = vector.broadcast %cst_60 : f32 to vector<2x2xf32>
    %c232 = arith.constant 232 : index
    %c0_61 = arith.constant 0 : index
    %391 = vector.load %arg2[%c232, %c0_61] : memref<536x128xf32, #tpu.memory_space<vmem>>, vector<40x8xf32>
    %392 = arith.truncf %388 : vector<20x40xf32> to vector<20x40xbf16>
    %393 = arith.truncf %391 : vector<40x8xf32> to vector<40x8xbf16>
    %cst_62 = arith.constant dense<0.000000e+00> : vector<20x8xf32>
    %394 = tpu.matmul %392, %393, %cst_62 {dimension_numbers = #tpu.dot_dimension_numbers<[1], [0], [0], [1], [0, 0, 1, 1], [], []>} : vector<20x40xbf16>, vector<40x8xbf16>, vector<20x8xf32> -> vector<20x8xf32>
    %c272 = arith.constant 272 : index
    %c0_63 = arith.constant 0 : index
    %395 = vector.load %arg2[%c272, %c0_63] : memref<536x128xf32, #tpu.memory_space<vmem>>, vector<40x8xf32>
    %396 = arith.truncf %388 : vector<20x40xf32> to vector<20x40xbf16>
    %397 = arith.truncf %395 : vector<40x8xf32> to vector<40x8xbf16>
    %cst_64 = arith.constant dense<0.000000e+00> : vector<20x8xf32>
    %398 = tpu.matmul %396, %397, %cst_64 {dimension_numbers = #tpu.dot_dimension_numbers<[1], [0], [0], [1], [0, 0, 1, 1], [], []>} : vector<20x40xbf16>, vector<40x8xbf16>, vector<20x8xf32> -> vector<20x8xf32>
    %c312 = arith.constant 312 : index
    %c0_65 = arith.constant 0 : index
    %399 = vector.load %arg2[%c312, %c0_65] : memref<536x128xf32, #tpu.memory_space<vmem>>, vector<1x8xf32>
    %400 = vector.extract_strided_slice %394 {offsets = [0, 0], sizes = [9, 8], strides = [1, 1]} : vector<20x8xf32> to vector<9x8xf32>
    %401 = vector.extract_strided_slice %398 {offsets = [1, 0], sizes = [9, 8], strides = [1, 1]} : vector<20x8xf32> to vector<9x8xf32>
    %402 = arith.addf %400, %401 : vector<9x8xf32>
    %403 = vector.broadcast %399 : vector<1x8xf32> to vector<9x8xf32>
    %404 = arith.addf %402, %403 : vector<9x8xf32>
    %cst_66 = arith.constant 0.000000e+00 : f32
    %405 = vector.broadcast %cst_66 : f32 to vector<9x8xf32>
    %406 = arith.maximumf %404, %405 : vector<9x8xf32>
    %cst_67 = arith.constant dense<0xFF800000> : vector<8xf32>
    %407 = vector.multi_reduction <maximumf>, %406, %cst_67 [0] : vector<9x8xf32> to vector<8xf32>
    %408 = vector.shape_cast %407 : vector<8xf32> to vector<1x8xf32>
    %409 = vector.extract_strided_slice %394 {offsets = [10, 0], sizes = [9, 8], strides = [1, 1]} : vector<20x8xf32> to vector<9x8xf32>
    %410 = vector.extract_strided_slice %398 {offsets = [11, 0], sizes = [9, 8], strides = [1, 1]} : vector<20x8xf32> to vector<9x8xf32>
    %411 = arith.addf %409, %410 : vector<9x8xf32>
    %412 = vector.broadcast %399 : vector<1x8xf32> to vector<9x8xf32>
    %413 = arith.addf %411, %412 : vector<9x8xf32>
    %cst_68 = arith.constant 0.000000e+00 : f32
    %414 = vector.broadcast %cst_68 : f32 to vector<9x8xf32>
    %415 = arith.maximumf %413, %414 : vector<9x8xf32>
    %cst_69 = arith.constant dense<0xFF800000> : vector<8xf32>
    %416 = vector.multi_reduction <maximumf>, %415, %cst_69 [0] : vector<9x8xf32> to vector<8xf32>
    %417 = vector.shape_cast %416 : vector<8xf32> to vector<1x8xf32>
    %418 = tpu.concatenate %408, %417 in 0 : vector<1x8xf32>, vector<1x8xf32> -> vector<2x8xf32>
    %419 = vector.extract_strided_slice %389 {offsets = [0, 0], sizes = [8, 2], strides = [1, 1]} : vector<16x2xf32> to vector<8x2xf32>
    %cst_70 = arith.constant dense<0.000000e+00> : vector<2x2xf32>
    %420 = tpu.matmul %418, %419, %cst_70 {dimension_numbers = #tpu.dot_dimension_numbers<[1], [0], [0], [1], [0, 0, 1, 1], [], []>} : vector<2x8xf32>, vector<8x2xf32>, vector<2x2xf32> -> vector<2x2xf32>
    %421 = arith.addf %390, %420 : vector<2x2xf32>
    %c320 = arith.constant 320 : index
    %c0_71 = arith.constant 0 : index
    %422 = vector.load %arg2[%c320, %c0_71] : memref<536x128xf32, #tpu.memory_space<vmem>>, vector<40x8xf32>
    %423 = arith.truncf %388 : vector<20x40xf32> to vector<20x40xbf16>
    %424 = arith.truncf %422 : vector<40x8xf32> to vector<40x8xbf16>
    %cst_72 = arith.constant dense<0.000000e+00> : vector<20x8xf32>
    %425 = tpu.matmul %423, %424, %cst_72 {dimension_numbers = #tpu.dot_dimension_numbers<[1], [0], [0], [1], [0, 0, 1, 1], [], []>} : vector<20x40xbf16>, vector<40x8xbf16>, vector<20x8xf32> -> vector<20x8xf32>
    %c360 = arith.constant 360 : index
    %c0_73 = arith.constant 0 : index
    %426 = vector.load %arg2[%c360, %c0_73] : memref<536x128xf32, #tpu.memory_space<vmem>>, vector<40x8xf32>
    %427 = arith.truncf %388 : vector<20x40xf32> to vector<20x40xbf16>
    %428 = arith.truncf %426 : vector<40x8xf32> to vector<40x8xbf16>
    %cst_74 = arith.constant dense<0.000000e+00> : vector<20x8xf32>
    %429 = tpu.matmul %427, %428, %cst_74 {dimension_numbers = #tpu.dot_dimension_numbers<[1], [0], [0], [1], [0, 0, 1, 1], [], []>} : vector<20x40xbf16>, vector<40x8xbf16>, vector<20x8xf32> -> vector<20x8xf32>
    %c400 = arith.constant 400 : index
    %c0_75 = arith.constant 0 : index
    %430 = vector.load %arg2[%c400, %c0_75] : memref<536x128xf32, #tpu.memory_space<vmem>>, vector<40x8xf32>
    %431 = arith.truncf %388 : vector<20x40xf32> to vector<20x40xbf16>
    %432 = arith.truncf %430 : vector<40x8xf32> to vector<40x8xbf16>
    %cst_76 = arith.constant dense<0.000000e+00> : vector<20x8xf32>
    %433 = tpu.matmul %431, %432, %cst_76 {dimension_numbers = #tpu.dot_dimension_numbers<[1], [0], [0], [1], [0, 0, 1, 1], [], []>} : vector<20x40xbf16>, vector<40x8xbf16>, vector<20x8xf32> -> vector<20x8xf32>
    %c440 = arith.constant 440 : index
    %c0_77 = arith.constant 0 : index
    %434 = vector.load %arg2[%c440, %c0_77] : memref<536x128xf32, #tpu.memory_space<vmem>>, vector<1x8xf32>
    %435 = vector.extract_strided_slice %425 {offsets = [0, 0], sizes = [8, 8], strides = [1, 1]} : vector<20x8xf32> to vector<8x8xf32>
    %436 = vector.extract_strided_slice %429 {offsets = [1, 0], sizes = [8, 8], strides = [1, 1]} : vector<20x8xf32> to vector<8x8xf32>
    %437 = arith.addf %435, %436 : vector<8x8xf32>
    %438 = vector.extract_strided_slice %433 {offsets = [2, 0], sizes = [8, 8], strides = [1, 1]} : vector<20x8xf32> to vector<8x8xf32>
    %439 = arith.addf %437, %438 : vector<8x8xf32>
    %440 = vector.broadcast %434 : vector<1x8xf32> to vector<8x8xf32>
    %441 = arith.addf %439, %440 : vector<8x8xf32>
    %cst_78 = arith.constant 0.000000e+00 : f32
    %442 = vector.broadcast %cst_78 : f32 to vector<8x8xf32>
    %443 = arith.maximumf %441, %442 : vector<8x8xf32>
    %cst_79 = arith.constant dense<0xFF800000> : vector<8xf32>
    %444 = vector.multi_reduction <maximumf>, %443, %cst_79 [0] : vector<8x8xf32> to vector<8xf32>
    %445 = vector.shape_cast %444 : vector<8xf32> to vector<1x8xf32>
    %446 = vector.extract_strided_slice %425 {offsets = [10, 0], sizes = [8, 8], strides = [1, 1]} : vector<20x8xf32> to vector<8x8xf32>
    %447 = vector.extract_strided_slice %429 {offsets = [11, 0], sizes = [8, 8], strides = [1, 1]} : vector<20x8xf32> to vector<8x8xf32>
    %448 = arith.addf %446, %447 : vector<8x8xf32>
    %449 = vector.extract_strided_slice %433 {offsets = [12, 0], sizes = [8, 8], strides = [1, 1]} : vector<20x8xf32> to vector<8x8xf32>
    %450 = arith.addf %448, %449 : vector<8x8xf32>
    %451 = vector.broadcast %434 : vector<1x8xf32> to vector<8x8xf32>
    %452 = arith.addf %450, %451 : vector<8x8xf32>
    %cst_80 = arith.constant 0.000000e+00 : f32
    %453 = vector.broadcast %cst_80 : f32 to vector<8x8xf32>
    %454 = arith.maximumf %452, %453 : vector<8x8xf32>
    %cst_81 = arith.constant dense<0xFF800000> : vector<8xf32>
    %455 = vector.multi_reduction <maximumf>, %454, %cst_81 [0] : vector<8x8xf32> to vector<8xf32>
    %456 = vector.shape_cast %455 : vector<8xf32> to vector<1x8xf32>
    %457 = tpu.concatenate %445, %456 in 0 : vector<1x8xf32>, vector<1x8xf32> -> vector<2x8xf32>
    %458 = vector.extract_strided_slice %389 {offsets = [8, 0], sizes = [8, 2], strides = [1, 1]} : vector<16x2xf32> to vector<8x2xf32>
    %cst_82 = arith.constant dense<0.000000e+00> : vector<2x2xf32>
    %459 = tpu.matmul %457, %458, %cst_82 {dimension_numbers = #tpu.dot_dimension_numbers<[1], [0], [0], [1], [0, 0, 1, 1], [], []>} : vector<2x8xf32>, vector<8x2xf32>, vector<2x2xf32> -> vector<2x2xf32>
    %460 = arith.addf %421, %459 : vector<2x2xf32>
    %c448 = arith.constant 448 : index
    %c0_83 = arith.constant 0 : index
    %461 = vector.load %arg2[%c448, %c0_83] : memref<536x128xf32, #tpu.memory_space<vmem>>, vector<32x2xf32>
    %cst_84 = arith.constant dense<0.000000e+00> : vector<2x2xf32>
    %462 = tpu.matmul %343, %461, %cst_84 {dimension_numbers = #tpu.dot_dimension_numbers<[1], [0], [0], [1], [0, 0, 1, 1], [], []>} : vector<2x32xf32>, vector<32x2xf32>, vector<2x2xf32> -> vector<2x2xf32>
    %c480 = arith.constant 480 : index
    %c0_85 = arith.constant 0 : index
    %463 = vector.load %arg2[%c480, %c0_85] : memref<536x128xf32, #tpu.memory_space<vmem>>, vector<32x2xf32>
    %cst_86 = arith.constant dense<0.000000e+00> : vector<2x2xf32>
    %464 = tpu.matmul %382, %463, %cst_86 {dimension_numbers = #tpu.dot_dimension_numbers<[1], [0], [0], [1], [0, 0, 1, 1], [], []>} : vector<2x32xf32>, vector<32x2xf32>, vector<2x2xf32> -> vector<2x2xf32>
    %465 = arith.addf %462, %464 : vector<2x2xf32>
    %466 = arith.addf %465, %460 : vector<2x2xf32>
    %c528 = arith.constant 528 : index
    %c0_87 = arith.constant 0 : index
    %467 = vector.load %arg2[%c528, %c0_87] : memref<536x128xf32, #tpu.memory_space<vmem>>, vector<1x2xf32>
    %468 = vector.broadcast %467 : vector<1x2xf32> to vector<2x2xf32>
    %469 = arith.addf %466, %468 : vector<2x2xf32>
    %c0_88 = arith.constant 0 : index
    %c0_89 = arith.constant 0 : index
    %470 = vector.load %arg3[%c0_88, %c0_89] : memref<2x2xf32, #tpu.memory_space<vmem>>, vector<2x2xf32>
    tpu.vector_store %arg3[%c0_88, %c0_89], %469 {strides = array<i32>} : memref<2x2xf32, #tpu.memory_space<vmem>>, vector<2x2xf32>,
    return
  }
}

</mosaic_0001>

<llo_original>
// kernel: tpu_custom_call.1
$region0: #{tpu_custom_call.1}
  #allocation0 [shape = 'u32[]', space=smem, size = 0x4, offset = 0x4, fixed_abs, tag = 'smem constant byte address 0x4 - core index']
  #allocation1 [shape = 'u32[72,128]{1,0:T(1,128)}', space=vmem, size = 0x9000, scoped, tag = 'internal scratch']
  %s0 = inlined_call_operand.vmem [shape: s32[40,1], index: 0, kind: input, shape index: {}]
  %s1 = inlined_call_operand.vmem [shape: f32[2,10], index: 1, kind: input, shape index: {}]
  %s2 = inlined_call_operand.hbm [shape: f32[536,128], index: 2, kind: input, shape index: {}]
  %s3 = inlined_call_operand.hbm [shape: f32[2,2], index: 3, kind: output, shape index: {}]
  %s4 = sld [smem:[#allocation0]]
  $region26: #{tpu_custom_call.1} parent=0
    _
  %s6 = ssub.s32 1, %s4
  %s7 = scalar_select 0, %s6, %s4
  $region1: #{tpu_custom_call.1} parent=0
    #allocation2 [shape = 'u8[274432]{0}', space=vmem, size = 0x43000, scoped, tag = 'input window, operand 2, single buffered']
    #allocation3 [shape = 's32[1]{0}', space=sflag, size = 0x4, scoped, tag = 'scoped memory for tpu_custom_call.1']
    #allocation4 [shape = 's32[1]{0}', space=sflag, size = 0x4, scoped, tag = 'scoped memory for tpu_custom_call.1']
    #allocation5 [shape = 'u8[1024]{0}', space=vmem, size = 0x400, scoped, tag = 'output window, operand 0, single buffered']
    %8 = vsyncpa [#allocation3], 0
    %9 = vsyncpa [#allocation4], 0
    // Predicated region
    $region2: #{tpu_custom_call.1} parent=1 // pred_check
      _
    $region3: #{tpu_custom_call.1} parent=1 // pred_check_branch
      %11 = sbr.rel (0) target = $region5
    $region4: #{tpu_custom_call.1} parent=1 // pred_region
      _
    $region5: #{tpu_custom_call.1} parent=1 // pred_fallthru
      _
    // Predicated region
    $region6: #{tpu_custom_call.1} parent=1 // pred_check
      _
    $region7: #{tpu_custom_call.1} parent=1 // pred_check_branch
      %13 = sbr.rel (0) target = $region9
    $region8: #{tpu_custom_call.1} parent=1 // pred_region
      _
    $region9: #{tpu_custom_call.1} parent=1 // pred_fallthru
      _
    // Predicated region
    $region10: #{tpu_custom_call.1} parent=1 // pred_check
      _
    $region11: #{tpu_custom_call.1} parent=1 // pred_check_branch
      %15 = sbr.rel (0) target = $region13
    $region12: #{tpu_custom_call.1} parent=1 // pred_region
      %17 = vsyncadd [#allocation3], 0
      %s18 = sshll.u32 %s2, 4
      %s19 = int_to_ptr.hbm [resolvable:$true] %s18
      %s20 = sshll.u32 [#allocation2], 4
      %s21 = int_to_ptr.vmem [resolvable:$true] %s20
      %26 = dma.hbm_to_vmem [thread:$0]  %s19, 8576, %s21, [#allocation3], 128, 128, 8
    $region13: #{tpu_custom_call.1} parent=1 // pred_fallthru
      _
    // Predicated region
    $region14: #{tpu_custom_call.1} parent=1 // pred_check
      _
    $region15: #{tpu_custom_call.1} parent=1 // pred_check_branch
      %28 = sbr.rel (0) target = $region17
    $region16: #{tpu_custom_call.1} parent=1 // pred_region
      %30 = dma.done [#allocation3], 8576
    $region17: #{tpu_custom_call.1} parent=1 // pred_fallthru
      _
    %v32 = vld [vmem:[%s0] sm:$0xff]
    %v33 = vld [vmem:[%s0 + $0x8] sm:$0xff]
    %v34 = vlaneseq
    %v35 = vand.u32 %v34, 127
    %36 = vset.pattern.permute.xlu0 0
    %37 = vperm.xlu0 %36, %v32
    %v38 = vpop.permute.xlu0 %37
    %39 = vset.pattern.permute.xlu0 0
    %40 = vperm.xlu0 %39, %v33
    %v41 = vpop.permute.xlu0 %40
    %vm42 = vcmp.eq.s32.totalorder %v38, %v35
    %vm43 = vcmp.eq.s32.totalorder %v41, %v35
    %v44 = vld [vmem:[#allocation2] sm:$0xff]
    %v45 = vld [vmem:[#allocation2 + $0x8] sm:$0xff]
    %v46 = vld [vmem:[#allocation2 + $0x10] sm:$0xff]
    %v47 = vld [vmem:[#allocation2 + $0x18] sm:$0xff]
    %v48 = vld [vmem:[#allocation2 + $0x20] sm:$0xff]
    %v49 = vld [vmem:[#allocation2 + $0x28] sm:$0xff]
    %v50 = vld [vmem:[#allocation2 + $0x30] sm:$0x3]
    %v51 = vsel %vm42, 1, 0
    %v52 = vsel %vm43, 1, 0
    %v53 = vcvt.s32.f32 %v51
    %v54 = vcvt.s32.f32 %v52
    %v55 = vpack.c.bf16 %v54, %v53
    %v56 = vpack.c.bf16 %v45, %v44
    %v57 = vpack.c.bf16 %v47, %v46
    %v58 = vpack.c.bf16 %v49, %v48
    %v59 = vpack.c.bf16 %v50, %v50
    %v60 = vld [vmem:[#allocation2 + $0x58] sm:$0x1]
    %v61 = vperm.slane %v60, 0
    %vm62 = vcmask 408576
    %v64 = vsel %vm62, %v55, 0
    %vm66 = vcmask 1040384
    %v68 = vsel %vm66, %v59, 0
    %70 = vmatpush.bf16.msra.mxu0 0
    %71 = vmatpush.bf16.msra.mxu0 0
    %72 = vmatpush.bf16.msra.mxu0 0
    %73 = vmatpush.bf16.msra.mxu0 0
    %74 = vmatpush.bf16.msra.mxu0 %v68
    %75 = vmatpush.bf16.msra.mxu0 %v58
    %76 = vmatpush.bf16.msra.mxu0 %v57
    %77 = vmatpush.bf16.msra.mxu0 %v56
    %78 = vmatmul.bf16.gmra.mxu0 %v64
    %v79 = vpop.f32.mrf.mxu0
    %v80 = vadd.f32 %v61, %v79
    %v81 = vpop.f32.mrf.mxu0
    %v82 = vadd.f32 %v61, %v81
    %83 = vdwg.mxu0
    %v84 = vld [vmem:[#allocation2 + $0x38] sm:$0xff]
    %v85 = vld [vmem:[#allocation2 + $0x40] sm:$0xff]
    %v86 = vld [vmem:[#allocation2 + $0x48] sm:$0xff]
    %v87 = vld [vmem:[#allocation2 + $0x50] sm:$0xff]
    %v88 = vpack.c.bf16 %v85, %v84
    %v89 = vpack.c.bf16 %v87, %v86
    %v90 = vld [vmem:[#allocation2 + $0x80] sm:$0xff]
    %v91 = vld [vmem:[#allocation2 + $0x88] sm:$0xff]
    %v92 = vld [vmem:[#allocation2 + $0x90] sm:$0xff]
    %v93 = vld [vmem:[#allocation2 + $0x98] sm:$0xff]
    %v94 = vpack.c.bf16 %v91, %v90
    %v95 = vpack.c.bf16 %v93, %v92
    %v96 = vld [vmem:[#allocation2 + $0x60] sm:$0xff]
    %v97 = vld [vmem:[#allocation2 + $0x68] sm:$0xff]
    %v98 = vld [vmem:[#allocation2 + $0x70] sm:$0xff]
    %v99 = vld [vmem:[#allocation2 + $0x78] sm:$0xff]
    %v100 = vpack.c.bf16 %v97, %v96
    %v101 = vpack.c.bf16 %v99, %v98
    %v102 = vld [vmem:[#allocation2 + $0xa0] sm:$0x1]
    %v103 = vxor.u32 %v80, 2147483648
    %v104 = vmul.f32 %v103, 1.442695
    %v105 = vpow.pop %v104
    %v106 = vadd.f32 %v105, 1.0
    %v107 = vrcp.pop %v106
    %v108 = vmul.f32 %v106, %v107
    %v109 = vsub.f32 1.0, %v108
    %v110 = vmul.f32 %v107, %v109
    %v111 = vadd.f32 %v107, %v110
    %vm112 = vweird.f32 %v106
    %vm113 = vweird.f32 %v107
    %vm114 = vmor %vm112, %vm113
    %v115 = vsel %vm114, %v107, %v111
    %v116 = vand.u32 2147483647, %v106
    %vm117 = vcmp.eq.f32.partialorder %v116, 8.507059e+37
    %v118 = vand.u32 %v106, 2147483648
    %v119 = vor.u32 1.1754944e-38, %v118
    %v120 = vsel %vm117, %v119, %v115
    %v121 = vmul.f32 1.0, %v120
    %v122 = vtanh.pop %v80
    %v123 = vmul.f32 %v121, 0.0
    %125 = vrot.lane.b32.xlu0 %v122, 64
    %v126 = vpop.permute.xlu0 %125
    %v128 = vmul.f32 %v121, %v126
    %130 = vrot.lane.b32.xlu0 %v128, 32
    %v131 = vpop.permute.xlu0 %130
    %v133 = vadd.f32 %v123, %v131
    %v134 = vtanh.pop %v133
    %136 = vrot.lane.b32.xlu0 %v134, 64
    %v137 = vpop.permute.xlu0 %136
    %v139 = vmul.f32 %v121, %v137
    %v140 = vpack.c.bf16 %v139, %v139
    %142 = vrot.lane.b32.xlu0 %v140, 32
    %v143 = vpop.permute.xlu0 %142
    %vm144 = vcmask 261120
    %v146 = vsel %vm144, %v143, 0
    %148 = vmatpush.bf16.msra.mxu0 0
    %149 = vmatpush.bf16.msra.mxu0 0
    %150 = vmatpush.bf16.msra.mxu0 0
    %151 = vmatpush.bf16.msra.mxu0 0
    %152 = vmatpush.bf16.msra.mxu0 0
    %153 = vmatpush.bf16.msra.mxu0 0
    %154 = vmatpush.bf16.msra.mxu0 %v89
    %155 = vmatpush.bf16.msra.mxu0 %v88
    %156 = vmatmul.bf16.gmra.mxu0 %v146
    %v157 = vpop.f32.mrf.mxu0
    %v158 = vadd.f32 0.0, %v157
    %v159 = vpop.f32.mrf.mxu0
    %160 = vdwg.mxu0
    %v162 = vrot.slane %v158, 6
    %v164 = vadd.f32 %v80, %v162
    %v165 = vxor.u32 %v164, 2147483648
    %v166 = vmul.f32 %v165, 1.442695
    %v167 = vpow.pop %v166
    %v168 = vadd.f32 %v167, 1.0
    %v169 = vrcp.pop %v168
    %v170 = vmul.f32 %v168, %v169
    %v171 = vsub.f32 1.0, %v170
    %v172 = vmul.f32 %v169, %v171
    %v173 = vadd.f32 %v169, %v172
    %vm174 = vweird.f32 %v168
    %vm175 = vweird.f32 %v169
    %vm176 = vmor %vm174, %vm175
    %v177 = vsel %vm176, %v169, %v173
    %v178 = vand.u32 2147483647, %v168
    %vm179 = vcmp.eq.f32.partialorder %v178, 8.507059e+37
    %v180 = vand.u32 %v168, 2147483648
    %v181 = vor.u32 1.1754944e-38, %v180
    %v182 = vsel %vm179, %v181, %v177
    %v183 = vmul.f32 1.0, %v182
    %v184 = vtanh.pop %v164
    %v186 = vrot.slane %v133, 6
    %v188 = vmul.f32 %v183, %v186
    %190 = vrot.lane.b32.xlu0 %v184, 64
    %v191 = vpop.permute.xlu0 %190
    %v193 = vmul.f32 %v183, %v191
    %195 = vrot.lane.b32.xlu0 %v193, 32
    %v196 = vpop.permute.xlu0 %195
    %v198 = vadd.f32 %v188, %v196
    %v199 = vtanh.pop %v198
    %201 = vrot.lane.b32.xlu0 %v199, 64
    %v202 = vpop.permute.xlu0 %201
    %v204 = vmul.f32 %v183, %v202
    %v205 = vperm.slane %v102, 0
    %206 = vmatpush.bf16.msra.mxu0 0
    %207 = vmatpush.bf16.msra.mxu0 0
    %208 = vmatpush.bf16.msra.mxu0 0
    %209 = vmatpush.bf16.msra.mxu0 0
    %210 = vmatpush.bf16.msra.mxu0 0
    %211 = vmatpush.bf16.msra.mxu0 0
    %212 = vmatpush.bf16.msra.mxu0 %v101
    %213 = vmatpush.bf16.msra.mxu0 %v100
    %214 = vmatmul.bf16.gmra.mxu0 %v146
    %v215 = vpop.f32.mrf.mxu0
    %v216 = vadd.f32 %v205, %v215
    %v217 = vpop.f32.mrf.mxu0
    %218 = vdwg.mxu0
    %v219 = vxor.u32 %v216, 2147483648
    %v220 = vmul.f32 %v219, 1.442695
    %v221 = vpow.pop %v220
    %v222 = vadd.f32 %v221, 1.0
    %v223 = vrcp.pop %v222
    %v224 = vmul.f32 %v222, %v223
    %v225 = vsub.f32 1.0, %v224
    %v226 = vmul.f32 %v223, %v225
    %v227 = vadd.f32 %v223, %v226
    %vm228 = vweird.f32 %v222
    %vm229 = vweird.f32 %v223
    %vm230 = vmor %vm228, %vm229
    %v231 = vsel %vm230, %v223, %v227
    %v232 = vand.u32 2147483647, %v222
    %vm233 = vcmp.eq.f32.partialorder %v232, 8.507059e+37
    %v234 = vand.u32 %v222, 2147483648
    %v235 = vor.u32 1.1754944e-38, %v234
    %v236 = vsel %vm233, %v235, %v231
    %v237 = vmul.f32 1.0, %v236
    %v238 = vtanh.pop %v216
    %v239 = vmul.f32 %v237, 0.0
    %241 = vrot.lane.b32.xlu0 %v238, 64
    %v242 = vpop.permute.xlu0 %241
    %v244 = vmul.f32 %v237, %v242
    %246 = vrot.lane.b32.xlu0 %v244, 32
    %v247 = vpop.permute.xlu0 %246
    %v249 = vadd.f32 %v239, %v247
    %v250 = vtanh.pop %v249
    %252 = vrot.lane.b32.xlu0 %v250, 64
    %v253 = vpop.permute.xlu0 %252
    %v255 = vmul.f32 %v237, %v253
    %v256 = vpack.c.bf16 %v204, %v204
    %v258 = vrot.slane %v256, 1
    %259 = vrot.lane.b32.xlu0 %v258, 32
    %v260 = vpop.permute.xlu0 %259
    %v262 = vsel %vm144, %v260, 0
    %264 = vmatpush.bf16.msra.mxu0 0
    %265 = vmatpush.bf16.msra.mxu0 0
    %266 = vmatpush.bf16.msra.mxu0 0
    %267 = vmatpush.bf16.msra.mxu0 0
    %268 = vmatpush.bf16.msra.mxu0 0
    %269 = vmatpush.bf16.msra.mxu0 0
    %270 = vmatpush.bf16.msra.mxu0 %v89
    %271 = vmatpush.bf16.msra.mxu0 %v88
    %272 = vmatmul.bf16.gmra.mxu0 %v262
    %v273 = vpop.f32.mrf.mxu0
    %v274 = vadd.f32 0.0, %v273
    %v275 = vpop.f32.mrf.mxu0
    %276 = vdwg.mxu0
    %v278 = vrot.slane %v274, 4
    %v280 = vadd.f32 %v80, %v278
    %v281 = vxor.u32 %v280, 2147483648
    %v282 = vmul.f32 %v281, 1.442695
    %v283 = vpow.pop %v282
    %v284 = vadd.f32 %v283, 1.0
    %v285 = vrcp.pop %v284
    %v286 = vmul.f32 %v284, %v285
    %v287 = vsub.f32 1.0, %v286
    %v288 = vmul.f32 %v285, %v287
    %v289 = vadd.f32 %v285, %v288
    %vm290 = vweird.f32 %v284
    %vm291 = vweird.f32 %v285
    %vm292 = vmor %vm290, %vm291
    %v293 = vsel %vm292, %v285, %v289
    %v294 = vand.u32 2147483647, %v284
    %vm295 = vcmp.eq.f32.partialorder %v294, 8.507059e+37
    %v296 = vand.u32 %v284, 2147483648
    %v297 = vor.u32 1.1754944e-38, %v296
    %v298 = vsel %vm295, %v297, %v293
    %v299 = vmul.f32 1.0, %v298
    %v300 = vtanh.pop %v280
    %v302 = vrot.slane %v198, 6
    %v304 = vmul.f32 %v299, %v302
    %306 = vrot.lane.b32.xlu0 %v300, 64
    %v307 = vpop.permute.xlu0 %306
    %v309 = vmul.f32 %v299, %v307
    %311 = vrot.lane.b32.xlu0 %v309, 32
    %v312 = vpop.permute.xlu0 %311
    %v314 = vadd.f32 %v304, %v312
    %v315 = vtanh.pop %v314
    %317 = vrot.lane.b32.xlu0 %v315, 64
    %v318 = vpop.permute.xlu0 %317
    %v320 = vmul.f32 %v299, %v318
    %321 = vmatpush.bf16.msra.mxu0 0
    %322 = vmatpush.bf16.msra.mxu0 0
    %323 = vmatpush.bf16.msra.mxu0 0
    %324 = vmatpush.bf16.msra.mxu0 0
    %325 = vmatpush.bf16.msra.mxu0 0
    %326 = vmatpush.bf16.msra.mxu0 0
    %327 = vmatpush.bf16.msra.mxu0 %v101
    %328 = vmatpush.bf16.msra.mxu0 %v100
    %329 = vmatmul.bf16.gmra.mxu0 %v262
    %v330 = vpop.f32.mrf.mxu0
    %v331 = vadd.f32 %v205, %v330
    %v332 = vpop.f32.mrf.mxu0
    %333 = vdwg.mxu0
    %v334 = vpack.c.bf16 %v255, %v255
    %336 = vrot.lane.b32.xlu0 %v334, 32
    %v337 = vpop.permute.xlu0 %336
    %v339 = vsel %vm144, %v337, 0
    %341 = vmatpush.bf16.msra.mxu0 0
    %342 = vmatpush.bf16.msra.mxu0 0
    %343 = vmatpush.bf16.msra.mxu0 0
    %344 = vmatpush.bf16.msra.mxu0 0
    %345 = vmatpush.bf16.msra.mxu0 0
    %346 = vmatpush.bf16.msra.mxu0 0
    %347 = vmatpush.bf16.msra.mxu0 %v95
    %348 = vmatpush.bf16.msra.mxu0 %v94
    %349 = vmatmul.bf16.gmra.mxu0 %v339
    %v350 = vpop.f32.mrf.mxu0
    %v351 = vadd.f32 0.0, %v350
    %v352 = vpop.f32.mrf.mxu0
    %353 = vdwg.mxu0
    %v354 = vadd.f32 %v331, %v351
    %v355 = vxor.u32 %v354, 2147483648
    %v356 = vmul.f32 %v355, 1.442695
    %v357 = vpow.pop %v356
    %v358 = vadd.f32 %v357, 1.0
    %v359 = vrcp.pop %v358
    %v360 = vmul.f32 %v358, %v359
    %v361 = vsub.f32 1.0, %v360
    %v362 = vmul.f32 %v359, %v361
    %v363 = vadd.f32 %v359, %v362
    %vm364 = vweird.f32 %v358
    %vm365 = vweird.f32 %v359
    %vm366 = vmor %vm364, %vm365
    %v367 = vsel %vm366, %v359, %v363
    %v368 = vand.u32 2147483647, %v358
    %vm369 = vcmp.eq.f32.partialorder %v368, 8.507059e+37
    %v370 = vand.u32 %v358, 2147483648
    %v371 = vor.u32 1.1754944e-38, %v370
    %v372 = vsel %vm369, %v371, %v367
    %v373 = vmul.f32 1.0, %v372
    %v374 = vtanh.pop %v354
    %v375 = vmul.f32 %v373, %v249
    %377 = vrot.lane.b32.xlu0 %v374, 64
    %v378 = vpop.permute.xlu0 %377
    %v380 = vmul.f32 %v373, %v378
    %382 = vrot.lane.b32.xlu0 %v380, 32
    %v383 = vpop.permute.xlu0 %382
    %v385 = vadd.f32 %v375, %v383
    %v386 = vtanh.pop %v385
    %388 = vrot.lane.b32.xlu0 %v386, 64
    %v389 = vpop.permute.xlu0 %388
    %v391 = vmul.f32 %v373, %v389
    %v392 = vpack.c.bf16 %v320, %v320
    %v394 = vrot.slane %v392, 2
    %395 = vrot.lane.b32.xlu0 %v394, 32
    %v396 = vpop.permute.xlu0 %395
    %v398 = vsel %vm144, %v396, 0
    %400 = vmatpush.bf16.msra.mxu0 0
    %401 = vmatpush.bf16.msra.mxu0 0
    %402 = vmatpush.bf16.msra.mxu0 0
    %403 = vmatpush.bf16.msra.mxu0 0
    %404 = vmatpush.bf16.msra.mxu0 0
    %405 = vmatpush.bf16.msra.mxu0 0
    %406 = vmatpush.bf16.msra.mxu0 %v89
    %407 = vmatpush.bf16.msra.mxu0 %v88
    %408 = vmatmul.bf16.gmra.mxu0 %v398
    %v409 = vpop.f32.mrf.mxu0
    %v410 = vadd.f32 0.0, %v409
    %v411 = vpop.f32.mrf.mxu0
    %412 = vdwg.mxu0
    %v414 = vrot.slane %v410, 2
    %v416 = vadd.f32 %v80, %v414
    %v417 = vxor.u32 %v416, 2147483648
    %v418 = vmul.f32 %v417, 1.442695
    %v419 = vpow.pop %v418
    %v420 = vadd.f32 %v419, 1.0
    %v421 = vrcp.pop %v420
    %v422 = vmul.f32 %v420, %v421
    %v423 = vsub.f32 1.0, %v422
    %v424 = vmul.f32 %v421, %v423
    %v425 = vadd.f32 %v421, %v424
    %vm426 = vweird.f32 %v420
    %vm427 = vweird.f32 %v421
    %vm428 = vmor %vm426, %vm427
    %v429 = vsel %vm428, %v421, %v425
    %v430 = vand.u32 2147483647, %v420
    %vm431 = vcmp.eq.f32.partialorder %v430, 8.507059e+37
    %v432 = vand.u32 %v420, 2147483648
    %v433 = vor.u32 1.1754944e-38, %v432
    %v434 = vsel %vm431, %v433, %v429
    %v435 = vmul.f32 1.0, %v434
    %v436 = vtanh.pop %v416
    %v438 = vrot.slane %v314, 6
    %v440 = vmul.f32 %v435, %v438
    %442 = vrot.lane.b32.xlu0 %v436, 64
    %v443 = vpop.permute.xlu0 %442
    %v445 = vmul.f32 %v435, %v443
    %447 = vrot.lane.b32.xlu0 %v445, 32
    %v448 = vpop.permute.xlu0 %447
    %v450 = vadd.f32 %v440, %v448
    %v451 = vtanh.pop %v450
    %453 = vrot.lane.b32.xlu0 %v451, 64
    %v454 = vpop.permute.xlu0 %453
    %v456 = vmul.f32 %v435, %v454
    %457 = vmatpush.bf16.msra.mxu0 0
    %458 = vmatpush.bf16.msra.mxu0 0
    %459 = vmatpush.bf16.msra.mxu0 0
    %460 = vmatpush.bf16.msra.mxu0 0
    %461 = vmatpush.bf16.msra.mxu0 0
    %462 = vmatpush.bf16.msra.mxu0 0
    %463 = vmatpush.bf16.msra.mxu0 %v101
    %464 = vmatpush.bf16.msra.mxu0 %v100
    %465 = vmatmul.bf16.gmra.mxu0 %v398
    %v466 = vpop.f32.mrf.mxu0
    %v467 = vadd.f32 %v205, %v466
    %v468 = vpop.f32.mrf.mxu0
    %469 = vdwg.mxu0
    %v470 = vpack.c.bf16 %v391, %v391
    %472 = vrot.lane.b32.xlu0 %v470, 32
    %v473 = vpop.permute.xlu0 %472
    %v475 = vsel %vm144, %v473, 0
    %477 = vmatpush.bf16.msra.mxu0 0
    %478 = vmatpush.bf16.msra.mxu0 0
    %479 = vmatpush.bf16.msra.mxu0 0
    %480 = vmatpush.bf16.msra.mxu0 0
    %481 = vmatpush.bf16.msra.mxu0 0
    %482 = vmatpush.bf16.msra.mxu0 0
    %483 = vmatpush.bf16.msra.mxu0 %v95
    %484 = vmatpush.bf16.msra.mxu0 %v94
    %485 = vmatmul.bf16.gmra.mxu0 %v475
    %v486 = vpop.f32.mrf.mxu0
    %v487 = vadd.f32 0.0, %v486
    %v488 = vpop.f32.mrf.mxu0
    %489 = vdwg.mxu0
    %v490 = vadd.f32 %v467, %v487
    %v491 = vxor.u32 %v490, 2147483648
    %v492 = vmul.f32 %v491, 1.442695
    %v493 = vpow.pop %v492
    %v494 = vadd.f32 %v493, 1.0
    %v495 = vrcp.pop %v494
    %v496 = vmul.f32 %v494, %v495
    %v497 = vsub.f32 1.0, %v496
    %v498 = vmul.f32 %v495, %v497
    %v499 = vadd.f32 %v495, %v498
    %vm500 = vweird.f32 %v494
    %vm501 = vweird.f32 %v495
    %vm502 = vmor %vm500, %vm501
    %v503 = vsel %vm502, %v495, %v499
    %v504 = vand.u32 2147483647, %v494
    %vm505 = vcmp.eq.f32.partialorder %v504, 8.507059e+37
    %v506 = vand.u32 %v494, 2147483648
    %v507 = vor.u32 1.1754944e-38, %v506
    %v508 = vsel %vm505, %v507, %v503
    %v509 = vmul.f32 1.0, %v508
    %v510 = vtanh.pop %v490
    %v511 = vmul.f32 %v509, %v385
    %513 = vrot.lane.b32.xlu0 %v510, 64
    %v514 = vpop.permute.xlu0 %513
    %v516 = vmul.f32 %v509, %v514
    %518 = vrot.lane.b32.xlu0 %v516, 32
    %v519 = vpop.permute.xlu0 %518
    %v521 = vadd.f32 %v511, %v519
    %v522 = vtanh.pop %v521
    %524 = vrot.lane.b32.xlu0 %v522, 64
    %v525 = vpop.permute.xlu0 %524
    %v527 = vmul.f32 %v509, %v525
    %v528 = vpack.c.bf16 %v456, %v456
    %v530 = vrot.slane %v528, 3
    %531 = vrot.lane.b32.xlu0 %v530, 32
    %v532 = vpop.permute.xlu0 %531
    %v534 = vsel %vm144, %v532, 0
    %536 = vmatpush.bf16.msra.mxu0 0
    %537 = vmatpush.bf16.msra.mxu0 0
    %538 = vmatpush.bf16.msra.mxu0 0
    %539 = vmatpush.bf16.msra.mxu0 0
    %540 = vmatpush.bf16.msra.mxu0 0
    %541 = vmatpush.bf16.msra.mxu0 0
    %542 = vmatpush.bf16.msra.mxu0 %v89
    %543 = vmatpush.bf16.msra.mxu0 %v88
    %544 = vmatmul.bf16.gmra.mxu0 %v534
    %v545 = vpop.f32.mrf.mxu0
    %v546 = vadd.f32 0.0, %v545
    %v547 = vpop.f32.mrf.mxu0
    %548 = vdwg.mxu0
    %v549 = vadd.f32 %v82, %v546
    %v550 = vxor.u32 %v549, 2147483648
    %v551 = vmul.f32 %v550, 1.442695
    %v552 = vpow.pop %v551
    %v553 = vadd.f32 %v552, 1.0
    %v554 = vrcp.pop %v553
    %v555 = vmul.f32 %v553, %v554
    %v556 = vsub.f32 1.0, %v555
    %v557 = vmul.f32 %v554, %v556
    %v558 = vadd.f32 %v554, %v557
    %vm559 = vweird.f32 %v553
    %vm560 = vweird.f32 %v554
    %vm561 = vmor %vm559, %vm560
    %v562 = vsel %vm561, %v554, %v558
    %v563 = vand.u32 2147483647, %v553
    %vm564 = vcmp.eq.f32.partialorder %v563, 8.507059e+37
    %v565 = vand.u32 %v553, 2147483648
    %v566 = vor.u32 1.1754944e-38, %v565
    %v567 = vsel %vm564, %v566, %v562
    %v568 = vmul.f32 1.0, %v567
    %v569 = vtanh.pop %v549
    %v571 = vrot.slane %v450, 6
    %v573 = vmul.f32 %v568, %v571
    %575 = vrot.lane.b32.xlu0 %v569, 64
    %v576 = vpop.permute.xlu0 %575
    %v578 = vmul.f32 %v568, %v576
    %580 = vrot.lane.b32.xlu0 %v578, 32
    %v581 = vpop.permute.xlu0 %580
    %v583 = vadd.f32 %v573, %v581
    %v584 = vtanh.pop %v583
    %586 = vrot.lane.b32.xlu0 %v584, 64
    %v587 = vpop.permute.xlu0 %586
    %v589 = vmul.f32 %v568, %v587
    %590 = vmatpush.bf16.msra.mxu0 0
    %591 = vmatpush.bf16.msra.mxu0 0
    %592 = vmatpush.bf16.msra.mxu0 0
    %593 = vmatpush.bf16.msra.mxu0 0
    %594 = vmatpush.bf16.msra.mxu0 0
    %595 = vmatpush.bf16.msra.mxu0 0
    %596 = vmatpush.bf16.msra.mxu0 %v101
    %597 = vmatpush.bf16.msra.mxu0 %v100
    %598 = vmatmul.bf16.gmra.mxu0 %v534
    %v599 = vpop.f32.mrf.mxu0
    %v600 = vadd.f32 %v205, %v599
    %v601 = vpop.f32.mrf.mxu0
    %602 = vdwg.mxu0
    %v603 = vpack.c.bf16 %v527, %v527
    %605 = vrot.lane.b32.xlu0 %v603, 32
    %v606 = vpop.permute.xlu0 %605
    %v608 = vsel %vm144, %v606, 0
    %610 = vmatpush.bf16.msra.mxu0 0
    %611 = vmatpush.bf16.msra.mxu0 0
    %612 = vmatpush.bf16.msra.mxu0 0
    %613 = vmatpush.bf16.msra.mxu0 0
    %614 = vmatpush.bf16.msra.mxu0 0
    %615 = vmatpush.bf16.msra.mxu0 0
    %616 = vmatpush.bf16.msra.mxu0 %v95
    %617 = vmatpush.bf16.msra.mxu0 %v94
    %618 = vmatmul.bf16.gmra.mxu0 %v608
    %v619 = vpop.f32.mrf.mxu0
    %v620 = vadd.f32 0.0, %v619
    %v621 = vpop.f32.mrf.mxu0
    %622 = vdwg.mxu0
    %v623 = vadd.f32 %v600, %v620
    %v624 = vxor.u32 %v623, 2147483648
    %v625 = vmul.f32 %v624, 1.442695
    %v626 = vpow.pop %v625
    %v627 = vadd.f32 %v626, 1.0
    %v628 = vrcp.pop %v627
    %v629 = vmul.f32 %v627, %v628
    %v630 = vsub.f32 1.0, %v629
    %v631 = vmul.f32 %v628, %v630
    %v632 = vadd.f32 %v628, %v631
    %vm633 = vweird.f32 %v627
    %vm634 = vweird.f32 %v628
    %vm635 = vmor %vm633, %vm634
    %v636 = vsel %vm635, %v628, %v632
    %v637 = vand.u32 2147483647, %v627
    %vm638 = vcmp.eq.f32.partialorder %v637, 8.507059e+37
    %v639 = vand.u32 %v627, 2147483648
    %v640 = vor.u32 1.1754944e-38, %v639
    %v641 = vsel %vm638, %v640, %v636
    %v642 = vmul.f32 1.0, %v641
    %v643 = vtanh.pop %v623
    %v644 = vmul.f32 %v642, %v521
    %646 = vrot.lane.b32.xlu0 %v643, 64
    %v647 = vpop.permute.xlu0 %646
    %v649 = vmul.f32 %v642, %v647
    %651 = vrot.lane.b32.xlu0 %v649, 32
    %v652 = vpop.permute.xlu0 %651
    %v654 = vadd.f32 %v644, %v652
    %v655 = vtanh.pop %v654
    %657 = vrot.lane.b32.xlu0 %v655, 64
    %v658 = vpop.permute.xlu0 %657
    %v660 = vmul.f32 %v642, %v658
    %v661 = vpack.c.bf16 %v589, %v589
    %663 = vrot.lane.b32.xlu0 %v661, 32
    %v664 = vpop.permute.xlu0 %663
    %v666 = vsel %vm144, %v664, 0
    %668 = vmatpush.bf16.msra.mxu0 0
    %669 = vmatpush.bf16.msra.mxu0 0
    %670 = vmatpush.bf16.msra.mxu0 0
    %671 = vmatpush.bf16.msra.mxu0 0
    %672 = vmatpush.bf16.msra.mxu0 0
    %673 = vmatpush.bf16.msra.mxu0 0
    %674 = vmatpush.bf16.msra.mxu0 %v89
    %675 = vmatpush.bf16.msra.mxu0 %v88
    %676 = vmatmul.bf16.gmra.mxu0 %v666
    %v677 = vpop.f32.mrf.mxu0
    %v678 = vadd.f32 0.0, %v677
    %v679 = vpop.f32.mrf.mxu0
    %680 = vdwg.mxu0
    %v682 = vrot.slane %v678, 6
    %v684 = vadd.f32 %v82, %v682
    %v685 = vxor.u32 %v684, 2147483648
    %v686 = vmul.f32 %v685, 1.442695
    %v687 = vpow.pop %v686
    %v688 = vadd.f32 %v687, 1.0
    %v689 = vrcp.pop %v688
    %v690 = vmul.f32 %v688, %v689
    %v691 = vsub.f32 1.0, %v690
    %v692 = vmul.f32 %v689, %v691
    %v693 = vadd.f32 %v689, %v692
    %vm694 = vweird.f32 %v688
    %vm695 = vweird.f32 %v689
    %vm696 = vmor %vm694, %vm695
    %v697 = vsel %vm696, %v689, %v693
    %v698 = vand.u32 2147483647, %v688
    %vm699 = vcmp.eq.f32.partialorder %v698, 8.507059e+37
    %v700 = vand.u32 %v688, 2147483648
    %v701 = vor.u32 1.1754944e-38, %v700
    %v702 = vsel %vm699, %v701, %v697
    %v703 = vmul.f32 1.0, %v702
    %v704 = vtanh.pop %v684
    %v706 = vrot.slane %v583, 6
    %v708 = vmul.f32 %v703, %v706
    %710 = vrot.lane.b32.xlu0 %v704, 64
    %v711 = vpop.permute.xlu0 %710
    %v713 = vmul.f32 %v703, %v711
    %715 = vrot.lane.b32.xlu0 %v713, 32
    %v716 = vpop.permute.xlu0 %715
    %v718 = vadd.f32 %v708, %v716
    %v719 = vtanh.pop %v718
    %721 = vrot.lane.b32.xlu0 %v719, 64
    %v722 = vpop.permute.xlu0 %721
    %v724 = vmul.f32 %v703, %v722
    %725 = vmatpush.bf16.msra.mxu0 0
    %726 = vmatpush.bf16.msra.mxu0 0
    %727 = vmatpush.bf16.msra.mxu0 0
    %728 = vmatpush.bf16.msra.mxu0 0
    %729 = vmatpush.bf16.msra.mxu0 0
    %730 = vmatpush.bf16.msra.mxu0 0
    %731 = vmatpush.bf16.msra.mxu0 %v101
    %732 = vmatpush.bf16.msra.mxu0 %v100
    %733 = vmatmul.bf16.gmra.mxu0 %v666
    %v734 = vpop.f32.mrf.mxu0
    %v735 = vadd.f32 %v205, %v734
    %v736 = vpop.f32.mrf.mxu0
    %737 = vdwg.mxu0
    %v738 = vpack.c.bf16 %v660, %v660
    %740 = vrot.lane.b32.xlu0 %v738, 32
    %v741 = vpop.permute.xlu0 %740
    %v743 = vsel %vm144, %v741, 0
    %745 = vmatpush.bf16.msra.mxu0 0
    %746 = vmatpush.bf16.msra.mxu0 0
    %747 = vmatpush.bf16.msra.mxu0 0
    %748 = vmatpush.bf16.msra.mxu0 0
    %749 = vmatpush.bf16.msra.mxu0 0
    %750 = vmatpush.bf16.msra.mxu0 0
    %751 = vmatpush.bf16.msra.mxu0 %v95
    %752 = vmatpush.bf16.msra.mxu0 %v94
    %753 = vmatmul.bf16.gmra.mxu0 %v743
    %v754 = vpop.f32.mrf.mxu0
    %v755 = vadd.f32 0.0, %v754
    %v756 = vpop.f32.mrf.mxu0
    %757 = vdwg.mxu0
    %v758 = vadd.f32 %v735, %v755
    %v759 = vxor.u32 %v758, 2147483648
    %v760 = vmul.f32 %v759, 1.442695
    %v761 = vpow.pop %v760
    %v762 = vadd.f32 %v761, 1.0
    %v763 = vrcp.pop %v762
    %v764 = vmul.f32 %v762, %v763
    %v765 = vsub.f32 1.0, %v764
    %v766 = vmul.f32 %v763, %v765
    %v767 = vadd.f32 %v763, %v766
    %vm768 = vweird.f32 %v762
    %vm769 = vweird.f32 %v763
    %vm770 = vmor %vm768, %vm769
    %v771 = vsel %vm770, %v763, %v767
    %v772 = vand.u32 2147483647, %v762
    %vm773 = vcmp.eq.f32.partialorder %v772, 8.507059e+37
    %v774 = vand.u32 %v762, 2147483648
    %v775 = vor.u32 1.1754944e-38, %v774
    %v776 = vsel %vm773, %v775, %v771
    %v777 = vmul.f32 1.0, %v776
    %v778 = vtanh.pop %v758
    %v779 = vmul.f32 %v777, %v654
    %781 = vrot.lane.b32.xlu0 %v778, 64
    %v782 = vpop.permute.xlu0 %781
    %v784 = vmul.f32 %v777, %v782
    %786 = vrot.lane.b32.xlu0 %v784, 32
    %v787 = vpop.permute.xlu0 %786
    %v789 = vadd.f32 %v779, %v787
    %v790 = vtanh.pop %v789
    %792 = vrot.lane.b32.xlu0 %v790, 64
    %v793 = vpop.permute.xlu0 %792
    %v795 = vmul.f32 %v777, %v793
    %v796 = vpack.c.bf16 %v724, %v724
    %v798 = vrot.slane %v796, 1
    %799 = vrot.lane.b32.xlu0 %v798, 32
    %v800 = vpop.permute.xlu0 %799
    %v802 = vsel %vm144, %v800, 0
    %804 = vmatpush.bf16.msra.mxu0 0
    %805 = vmatpush.bf16.msra.mxu0 0
    %806 = vmatpush.bf16.msra.mxu0 0
    %807 = vmatpush.bf16.msra.mxu0 0
    %808 = vmatpush.bf16.msra.mxu0 0
    %809 = vmatpush.bf16.msra.mxu0 0
    %810 = vmatpush.bf16.msra.mxu0 %v89
    %811 = vmatpush.bf16.msra.mxu0 %v88
    %812 = vmatmul.bf16.gmra.mxu0 %v802
    %v813 = vpop.f32.mrf.mxu0
    %v814 = vadd.f32 0.0, %v813
    %v815 = vpop.f32.mrf.mxu0
    %816 = vdwg.mxu0
    %v818 = vrot.slane %v814, 4
    %v820 = vadd.f32 %v82, %v818
    %v821 = vxor.u32 %v820, 2147483648
    %v822 = vmul.f32 %v821, 1.442695
    %v823 = vpow.pop %v822
    %v824 = vadd.f32 %v823, 1.0
    %v825 = vrcp.pop %v824
    %v826 = vmul.f32 %v824, %v825
    %v827 = vsub.f32 1.0, %v826
    %v828 = vmul.f32 %v825, %v827
    %v829 = vadd.f32 %v825, %v828
    %vm830 = vweird.f32 %v824
    %vm831 = vweird.f32 %v825
    %vm832 = vmor %vm830, %vm831
    %v833 = vsel %vm832, %v825, %v829
    %v834 = vand.u32 2147483647, %v824
    %vm835 = vcmp.eq.f32.partialorder %v834, 8.507059e+37
    %v836 = vand.u32 %v824, 2147483648
    %v837 = vor.u32 1.1754944e-38, %v836
    %v838 = vsel %vm835, %v837, %v833
    %v839 = vmul.f32 1.0, %v838
    %v840 = vtanh.pop %v820
    %v842 = vrot.slane %v718, 6
    %v844 = vmul.f32 %v839, %v842
    %846 = vrot.lane.b32.xlu0 %v840, 64
    %v847 = vpop.permute.xlu0 %846
    %v849 = vmul.f32 %v839, %v847
    %851 = vrot.lane.b32.xlu0 %v849, 32
    %v852 = vpop.permute.xlu0 %851
    %v854 = vadd.f32 %v844, %v852
    %v855 = vtanh.pop %v854
    %857 = vrot.lane.b32.xlu0 %v855, 64
    %v858 = vpop.permute.xlu0 %857
    %v860 = vmul.f32 %v839, %v858
    %861 = vmatpush.bf16.msra.mxu0 0
    %862 = vmatpush.bf16.msra.mxu0 0
    %863 = vmatpush.bf16.msra.mxu0 0
    %864 = vmatpush.bf16.msra.mxu0 0
    %865 = vmatpush.bf16.msra.mxu0 0
    %866 = vmatpush.bf16.msra.mxu0 0
    %867 = vmatpush.bf16.msra.mxu0 %v101
    %868 = vmatpush.bf16.msra.mxu0 %v100
    %869 = vmatmul.bf16.gmra.mxu0 %v802
    %v870 = vpop.f32.mrf.mxu0
    %v871 = vadd.f32 %v205, %v870
    %v872 = vpop.f32.mrf.mxu0
    %873 = vdwg.mxu0
    %v874 = vpack.c.bf16 %v795, %v795
    %876 = vrot.lane.b32.xlu0 %v874, 32
    %v877 = vpop.permute.xlu0 %876
    %v879 = vsel %vm144, %v877, 0
    %881 = vmatpush.bf16.msra.mxu0 0
    %882 = vmatpush.bf16.msra.mxu0 0
    %883 = vmatpush.bf16.msra.mxu0 0
    %884 = vmatpush.bf16.msra.mxu0 0
    %885 = vmatpush.bf16.msra.mxu0 0
    %886 = vmatpush.bf16.msra.mxu0 0
    %887 = vmatpush.bf16.msra.mxu0 %v95
    %888 = vmatpush.bf16.msra.mxu0 %v94
    %889 = vmatmul.bf16.gmra.mxu0 %v879
    %v890 = vpop.f32.mrf.mxu0
    %v891 = vadd.f32 0.0, %v890
    %v892 = vpop.f32.mrf.mxu0
    %893 = vdwg.mxu0
    %v894 = vadd.f32 %v871, %v891
    %v895 = vxor.u32 %v894, 2147483648
    %v896 = vmul.f32 %v895, 1.442695
    %v897 = vpow.pop %v896
    %v898 = vadd.f32 %v897, 1.0
    %v899 = vrcp.pop %v898
    %v900 = vmul.f32 %v898, %v899
    %v901 = vsub.f32 1.0, %v900
    %v902 = vmul.f32 %v899, %v901
    %v903 = vadd.f32 %v899, %v902
    %vm904 = vweird.f32 %v898
    %vm905 = vweird.f32 %v899
    %vm906 = vmor %vm904, %vm905
    %v907 = vsel %vm906, %v899, %v903
    %v908 = vand.u32 2147483647, %v898
    %vm909 = vcmp.eq.f32.partialorder %v908, 8.507059e+37
    %v910 = vand.u32 %v898, 2147483648
    %v911 = vor.u32 1.1754944e-38, %v910
    %v912 = vsel %vm909, %v911, %v907
    %v913 = vmul.f32 1.0, %v912
    %v914 = vtanh.pop %v894
    %v915 = vmul.f32 %v913, %v789
    %917 = vrot.lane.b32.xlu0 %v914, 64
    %v918 = vpop.permute.xlu0 %917
    %v920 = vmul.f32 %v913, %v918
    %922 = vrot.lane.b32.xlu0 %v920, 32
    %v923 = vpop.permute.xlu0 %922
    %v925 = vadd.f32 %v915, %v923
    %v926 = vtanh.pop %v925
    %928 = vrot.lane.b32.xlu0 %v926, 64
    %v929 = vpop.permute.xlu0 %928
    %v931 = vmul.f32 %v913, %v929
    %v932 = vpack.c.bf16 %v860, %v860
    %v934 = vrot.slane %v932, 2
    %935 = vrot.lane.b32.xlu0 %v934, 32
    %v936 = vpop.permute.xlu0 %935
    %v938 = vsel %vm144, %v936, 0
    %940 = vmatpush.bf16.msra.mxu0 0
    %941 = vmatpush.bf16.msra.mxu0 0
    %942 = vmatpush.bf16.msra.mxu0 0
    %943 = vmatpush.bf16.msra.mxu0 0
    %944 = vmatpush.bf16.msra.mxu0 0
    %945 = vmatpush.bf16.msra.mxu0 0
    %946 = vmatpush.bf16.msra.mxu0 %v89
    %947 = vmatpush.bf16.msra.mxu0 %v88
    %948 = vmatmul.bf16.gmra.mxu0 %v938
    %v949 = vpop.f32.mrf.mxu0
    %v950 = vadd.f32 0.0, %v949
    %v951 = vpop.f32.mrf.mxu0
    %952 = vdwg.mxu0
    %v954 = vrot.slane %v950, 2
    %v956 = vadd.f32 %v82, %v954
    %v957 = vxor.u32 %v956, 2147483648
    %v958 = vmul.f32 %v957, 1.442695
    %v959 = vpow.pop %v958
    %v960 = vadd.f32 %v959, 1.0
    %v961 = vrcp.pop %v960
    %v962 = vmul.f32 %v960, %v961
    %v963 = vsub.f32 1.0, %v962
    %v964 = vmul.f32 %v961, %v963
    %v965 = vadd.f32 %v961, %v964
    %vm966 = vweird.f32 %v960
    %vm967 = vweird.f32 %v961
    %vm968 = vmor %vm966, %vm967
    %v969 = vsel %vm968, %v961, %v965
    %v970 = vand.u32 2147483647, %v960
    %vm971 = vcmp.eq.f32.partialorder %v970, 8.507059e+37
    %v972 = vand.u32 %v960, 2147483648
    %v973 = vor.u32 1.1754944e-38, %v972
    %v974 = vsel %vm971, %v973, %v969
    %v975 = vmul.f32 1.0, %v974
    %v976 = vtanh.pop %v956
    %v978 = vrot.slane %v854, 6
    %v980 = vmul.f32 %v975, %v978
    %982 = vrot.lane.b32.xlu0 %v976, 64
    %v983 = vpop.permute.xlu0 %982
    %v985 = vmul.f32 %v975, %v983
    %987 = vrot.lane.b32.xlu0 %v985, 32
    %v988 = vpop.permute.xlu0 %987
    %v990 = vadd.f32 %v980, %v988
    %v991 = vtanh.pop %v990
    %993 = vrot.lane.b32.xlu0 %v991, 64
    %v994 = vpop.permute.xlu0 %993
    %v996 = vmul.f32 %v975, %v994
    %997 = vmatpush.bf16.msra.mxu0 0
    %998 = vmatpush.bf16.msra.mxu0 0
    %999 = vmatpush.bf16.msra.mxu0 0
    %1000 = vmatpush.bf16.msra.mxu0 0
    %1001 = vmatpush.bf16.msra.mxu0 0
    %1002 = vmatpush.bf16.msra.mxu0 0
    %1003 = vmatpush.bf16.msra.mxu0 %v101
    %1004 = vmatpush.bf16.msra.mxu0 %v100
    %1005 = vmatmul.bf16.gmra.mxu0 %v938
    %v1006 = vpop.f32.mrf.mxu0
    %v1007 = vadd.f32 %v205, %v1006
    %v1008 = vpop.f32.mrf.mxu0
    %1009 = vdwg.mxu0
    %v1010 = vpack.c.bf16 %v931, %v931
    %1012 = vrot.lane.b32.xlu0 %v1010, 32
    %v1013 = vpop.permute.xlu0 %1012
    %v1015 = vsel %vm144, %v1013, 0
    %1017 = vmatpush.bf16.msra.mxu0 0
    %1018 = vmatpush.bf16.msra.mxu0 0
    %1019 = vmatpush.bf16.msra.mxu0 0
    %1020 = vmatpush.bf16.msra.mxu0 0
    %1021 = vmatpush.bf16.msra.mxu0 0
    %1022 = vmatpush.bf16.msra.mxu0 0
    %1023 = vmatpush.bf16.msra.mxu0 %v95
    %1024 = vmatpush.bf16.msra.mxu0 %v94
    %1025 = vmatmul.bf16.gmra.mxu0 %v1015
    %v1026 = vpop.f32.mrf.mxu0
    %v1027 = vadd.f32 0.0, %v1026
    %v1028 = vpop.f32.mrf.mxu0
    %1029 = vdwg.mxu0
    %v1030 = vadd.f32 %v1007, %v1027
    %v1031 = vxor.u32 %v1030, 2147483648
    %v1032 = vmul.f32 %v1031, 1.442695
    %v1033 = vpow.pop %v1032
    %v1034 = vadd.f32 %v1033, 1.0
    %v1035 = vrcp.pop %v1034
    %v1036 = vmul.f32 %v1034, %v1035
    %v1037 = vsub.f32 1.0, %v1036
    %v1038 = vmul.f32 %v1035, %v1037
    %v1039 = vadd.f32 %v1035, %v1038
    %vm1040 = vweird.f32 %v1034
    %vm1041 = vweird.f32 %v1035
    %vm1042 = vmor %vm1040, %vm1041
    %v1043 = vsel %vm1042, %v1035, %v1039
    %v1044 = vand.u32 2147483647, %v1034
    %vm1045 = vcmp.eq.f32.partialorder %v1044, 8.507059e+37
    %v1046 = vand.u32 %v1034, 2147483648
    %v1047 = vor.u32 1.1754944e-38, %v1046
    %v1048 = vsel %vm1045, %v1047, %v1043
    %v1049 = vmul.f32 1.0, %v1048
    %v1050 = vtanh.pop %v1030
    %v1051 = vmul.f32 %v1049, %v925
    %1053 = vrot.lane.b32.xlu0 %v1050, 64
    %v1054 = vpop.permute.xlu0 %1053
    %v1056 = vmul.f32 %v1049, %v1054
    %1058 = vrot.lane.b32.xlu0 %v1056, 32
    %v1059 = vpop.permute.xlu0 %1058
    %v1061 = vadd.f32 %v1051, %v1059
    %v1062 = vtanh.pop %v1061
    %1064 = vrot.lane.b32.xlu0 %v1062, 64
    %v1065 = vpop.permute.xlu0 %1064
    %v1067 = vmul.f32 %v1049, %v1065
    %v1068 = vpack.c.bf16 %v996, %v996
    %v1070 = vrot.slane %v1068, 3
    %1071 = vrot.lane.b32.xlu0 %v1070, 32
    %v1072 = vpop.permute.xlu0 %1071
    %v1074 = vsel %vm144, %v1072, 0
    %1076 = vmatpush.bf16.msra.mxu0 0
    %1077 = vmatpush.bf16.msra.mxu0 0
    %1078 = vmatpush.bf16.msra.mxu0 0
    %1079 = vmatpush.bf16.msra.mxu0 0
    %1080 = vmatpush.bf16.msra.mxu0 0
    %1081 = vmatpush.bf16.msra.mxu0 0
    %1082 = vmatpush.bf16.msra.mxu0 %v101
    %1083 = vmatpush.bf16.msra.mxu0 %v100
    %1084 = vmatmul.bf16.gmra.mxu0 %v1074
    %v1085 = vpop.f32.mrf.mxu0
    %v1086 = vadd.f32 %v205, %v1085
    %v1087 = vpop.f32.mrf.mxu0
    %1088 = vdwg.mxu0
    %v1089 = vpack.c.bf16 %v1067, %v1067
    %1091 = vrot.lane.b32.xlu0 %v1089, 32
    %v1092 = vpop.permute.xlu0 %1091
    %v1094 = vsel %vm144, %v1092, 0
    %1096 = vmatpush.bf16.msra.mxu0 0
    %1097 = vmatpush.bf16.msra.mxu0 0
    %1098 = vmatpush.bf16.msra.mxu0 0
    %1099 = vmatpush.bf16.msra.mxu0 0
    %1100 = vmatpush.bf16.msra.mxu0 0
    %1101 = vmatpush.bf16.msra.mxu0 0
    %1102 = vmatpush.bf16.msra.mxu0 %v95
    %1103 = vmatpush.bf16.msra.mxu0 %v94
    %1104 = vmatmul.bf16.gmra.mxu0 %v1094
    %v1105 = vpop.f32.mrf.mxu0
    %v1106 = vadd.f32 0.0, %v1105
    %v1107 = vpop.f32.mrf.mxu0
    %1108 = vdwg.mxu0
    %v1109 = vadd.f32 %v1086, %v1106
    %v1110 = vxor.u32 %v1109, 2147483648
    %v1111 = vmul.f32 %v1110, 1.442695
    %v1112 = vpow.pop %v1111
    %v1113 = vadd.f32 %v1112, 1.0
    %v1114 = vrcp.pop %v1113
    %v1115 = vmul.f32 %v1113, %v1114
    %v1116 = vsub.f32 1.0, %v1115
    %v1117 = vmul.f32 %v1114, %v1116
    %v1118 = vadd.f32 %v1114, %v1117
    %vm1119 = vweird.f32 %v1113
    %vm1120 = vweird.f32 %v1114
    %vm1121 = vmor %vm1119, %vm1120
    %v1122 = vsel %vm1121, %v1114, %v1118
    %v1123 = vand.u32 2147483647, %v1113
    %vm1124 = vcmp.eq.f32.partialorder %v1123, 8.507059e+37
    %v1125 = vand.u32 %v1113, 2147483648
    %v1126 = vor.u32 1.1754944e-38, %v1125
    %v1127 = vsel %vm1124, %v1126, %v1122
    %v1128 = vmul.f32 1.0, %v1127
    %v1129 = vtanh.pop %v1109
    %v1130 = vmul.f32 %v1128, %v1061
    %1132 = vrot.lane.b32.xlu0 %v1129, 64
    %v1133 = vpop.permute.xlu0 %1132
    %v1135 = vmul.f32 %v1128, %v1133
    %1137 = vrot.lane.b32.xlu0 %v1135, 32
    %v1138 = vpop.permute.xlu0 %1137
    %v1140 = vadd.f32 %v1130, %v1138
    %v1141 = vtanh.pop %v1140
    %1143 = vrot.lane.b32.xlu0 %v1141, 64
    %v1144 = vpop.permute.xlu0 %1143
    %v1146 = vmul.f32 %v1128, %v1144
    %v1147 = vld [vmem:[%s1] sm:$0x3]
    %v1148 = vld [vmem:[#allocation2 + $0xa8] sm:$0xff]
    %v1149 = vld [vmem:[#allocation2 + $0xb0] sm:$0x3]
    %v1150 = vpack.c.bf16 %v1147, %v1147
    %v1151 = vpack.c.bf16 %v1149, %v1148
    %v1152 = vld [vmem:[#allocation2 + $0xb8] sm:$0x1]
    %v1153 = vperm.slane %v1152, 0
    %vm1154 = vcmask 80896
    %v1156 = vsel %vm1154, %v1150, 0
    %vm1158 = vcmask 1044480
    %v1160 = vsel %vm1158, %v1151, 0
    %1162 = vmatpush.bf16.msra.mxu0 0
    %1163 = vmatpush.bf16.msra.mxu0 0
    %1164 = vmatpush.bf16.msra.mxu0 0
    %1165 = vmatpush.bf16.msra.mxu0 0
    %1166 = vmatpush.bf16.msra.mxu0 0
    %1167 = vmatpush.bf16.msra.mxu0 0
    %1168 = vmatpush.bf16.msra.mxu0 0
    %1169 = vmatpush.bf16.msra.mxu0 %v1160
    %1170 = vmatmul.bf16.gmra.mxu0 %v1156
    %v1171 = vpop.f32.mrf.mxu0
    %v1172 = vadd.f32 %v1153, %v1171
    %v1173 = vpop.f32.mrf.mxu0
    %1174 = vdwg.mxu0
    %v1175 = vxor.u32 %v1172, 2147483648
    %v1176 = vmul.f32 %v1175, 1.442695
    %v1177 = vpow.pop %v1176
    %v1178 = vadd.f32 %v1177, 1.0
    %v1179 = vrcp.pop %v1178
    %v1180 = vmul.f32 %v1178, %v1179
    %v1181 = vsub.f32 1.0, %v1180
    %v1182 = vmul.f32 %v1179, %v1181
    %v1183 = vadd.f32 %v1179, %v1182
    %vm1184 = vweird.f32 %v1178
    %vm1185 = vweird.f32 %v1179
    %vm1186 = vmor %vm1184, %vm1185
    %v1187 = vsel %vm1186, %v1179, %v1183
    %v1188 = vand.u32 2147483647, %v1178
    %vm1189 = vcmp.eq.f32.partialorder %v1188, 8.507059e+37
    %v1190 = vand.u32 %v1178, 2147483648
    %v1191 = vor.u32 1.1754944e-38, %v1190
    %v1192 = vsel %vm1189, %v1191, %v1187
    %v1193 = vmul.f32 1.0, %v1192
    %v1194 = vtanh.pop %v1172
    %1196 = vrot.lane.b32.xlu0 %v1194, 64
    %v1197 = vpop.permute.xlu0 %1196
    %v1199 = vmul.f32 %v1193, %v1197
    %v1200 = vtanh.pop %v1199
    %1202 = vrot.lane.b32.xlu0 %v1200, 96
    %v1203 = vpop.permute.xlu0 %1202
    %v1205 = vmul.f32 %v1193, %v1203
    %v1206 = vld [vmem:[#allocation2 + $0xc0] sm:$0xff]
    %v1207 = vld [vmem:[#allocation2 + $0xc8] sm:$0xff]
    %v1208 = vld [vmem:[#allocation2 + $0xd0] sm:$0xff]
    %v1209 = vld [vmem:[#allocation2 + $0xd8] sm:$0xff]
    %v1210 = vpack.c.bf16 %v1205, %v1205
    %v1211 = vpack.c.bf16 %v1207, %v1206
    %v1212 = vpack.c.bf16 %v1209, %v1208
    %v1213 = vld [vmem:[#allocation2 + $0xe0] sm:$0x1]
    %v1214 = vperm.slane %v1213, 0
    %1216 = vrot.lane.b32.xlu0 %v1210, 32
    %v1217 = vpop.permute.xlu0 %1216
    %v1219 = vsel %vm144, %v1217, 0
    %1221 = vmatpush.bf16.msra.mxu0 0
    %1222 = vmatpush.bf16.msra.mxu0 0
    %1223 = vmatpush.bf16.msra.mxu0 0
    %1224 = vmatpush.bf16.msra.mxu0 0
    %1225 = vmatpush.bf16.msra.mxu0 0
    %1226 = vmatpush.bf16.msra.mxu0 0
    %1227 = vmatpush.bf16.msra.mxu0 %v1212
    %1228 = vmatpush.bf16.msra.mxu0 %v1211
    %1229 = vmatmul.bf16.gmra.mxu0 %v1219
    %v1230 = vpop.f32.mrf.mxu0
    %v1231 = vadd.f32 %v1214, %v1230
    %v1232 = vpop.f32.mrf.mxu0
    %1233 = vdwg.mxu0
    %v1234 = vxor.u32 %v1231, 2147483648
    %v1235 = vmul.f32 %v1234, 1.442695
    %v1236 = vpow.pop %v1235
    %v1237 = vadd.f32 %v1236, 1.0
    %v1238 = vrcp.pop %v1237
    %v1239 = vmul.f32 %v1237, %v1238
    %v1240 = vsub.f32 1.0, %v1239
    %v1241 = vmul.f32 %v1238, %v1240
    %v1242 = vadd.f32 %v1238, %v1241
    %vm1243 = vweird.f32 %v1237
    %vm1244 = vweird.f32 %v1238
    %vm1245 = vmor %vm1243, %vm1244
    %v1246 = vsel %vm1245, %v1238, %v1242
    %v1247 = vand.u32 2147483647, %v1237
    %vm1248 = vcmp.eq.f32.partialorder %v1247, 8.507059e+37
    %v1249 = vand.u32 %v1237, 2147483648
    %v1250 = vor.u32 1.1754944e-38, %v1249
    %v1251 = vsel %vm1248, %v1250, %v1246
    %v1252 = vmul.f32 1.0, %v1251
    %v1253 = vtanh.pop %v1231
    %1255 = vrot.lane.b32.xlu0 %v1253, 64
    %v1256 = vpop.permute.xlu0 %1255
    %v1258 = vmul.f32 %v1252, %v1256
    %v1259 = vtanh.pop %v1258
    %1261 = vrot.lane.b32.xlu0 %v1259, 96
    %v1262 = vpop.permute.xlu0 %1261
    %v1264 = vmul.f32 %v1252, %v1262
    %v1265 = vld [vmem:[%s0 + $0x10] sm:$0xff]
    %v1266 = vld [vmem:[%s0 + $0x18] sm:$0xff]
    %v1267 = vld [vmem:[%s0 + $0x20] sm:$0xf]
    %1268 = vset.pattern.permute.xlu0 0
    %1269 = vperm.xlu0 %1268, %v1265
    %v1270 = vpop.permute.xlu0 %1269
    %1271 = vset.pattern.permute.xlu0 0
    %1272 = vperm.xlu0 %1271, %v1266
    %v1273 = vpop.permute.xlu0 %1272
    %1274 = vset.pattern.permute.xlu0 0
    %1275 = vperm.xlu0 %1274, %v1267
    %v1276 = vpop.permute.xlu0 %1275
    %vm1277 = vcmp.eq.s32.totalorder %v1270, %v35
    %vm1278 = vcmp.eq.s32.totalorder %v1273, %v35
    %vm1279 = vcmp.eq.s32.totalorder %v1276, %v35
    %v1280 = vld [vmem:[#allocation2 + $0x200] sm:$0xff]
    %v1281 = vld [vmem:[#allocation2 + $0x208] sm:$0xff]
    %v1282 = vld [vmem:[#allocation2 + $0xe8] sm:$0xff]
    %v1283 = vld [vmem:[#allocation2 + $0xf0] sm:$0xff]
    %v1284 = vld [vmem:[#allocation2 + $0xf8] sm:$0xff]
    %v1285 = vld [vmem:[#allocation2 + $0x100] sm:$0xff]
    %v1286 = vld [vmem:[#allocation2 + $0x108] sm:$0xff]
    %v1287 = vsel %vm1277, 1, 0
    %v1288 = vsel %vm1278, 1, 0
    %v1289 = vsel %vm1279, 1, 0
    %v1290 = vcvt.s32.f32 %v1287
    %v1291 = vcvt.s32.f32 %v1288
    %v1292 = vcvt.s32.f32 %v1289
    %v1293 = vpack.c.bf16 %v1291, %v1290
    %v1294 = vpack.c.bf16 %v1292, %v1292
    %v1295 = vpack.c.bf16 %v1283, %v1282
    %v1296 = vpack.c.bf16 %v1285, %v1284
    %v1297 = vpack.c.bf16 %v1286, %v1286
    %vm1298 = vcmask 326656
    %v1300 = vsel %vm1298, %v1293, 0
    %v1303 = vsel %vm1298, %v1294, 0
    %vm1305 = vcmask 1043456
    %v1307 = vsel %vm1305, %v1297, 0
    %1309 = vmatpush.bf16.msra.mxu0 0
    %1310 = vmatpush.bf16.msra.mxu0 0
    %1311 = vmatpush.bf16.msra.mxu0 0
    %1312 = vmatpush.bf16.msra.mxu0 0
    %1313 = vmatpush.bf16.msra.mxu0 0
    %1314 = vmatpush.bf16.msra.mxu0 %v1307
    %1315 = vmatpush.bf16.msra.mxu0 %v1296
    %1316 = vmatpush.bf16.msra.mxu0 %v1295
    %1317 = vmatmul.bf16.gmra.mxu0 %v1300
    %v1318 = vpop.f32.mrf.mxu0
    %v1319 = vadd.f32 0.0, %v1318
    %v1320 = vpop.f32.mrf.mxu0
    %v1321 = vadd.f32 0.0, %v1320
    %1322 = vmatmul.bf16.gmra.mxu0 %v1303
    %v1323 = vpop.f32.mrf.mxu0
    %v1324 = vadd.f32 0.0, %v1323
    %v1325 = vpop.f32.mrf.mxu0
    %1326 = vdwg.mxu0
    %v1327 = vld [vmem:[#allocation2 + $0x110] sm:$0xff]
    %v1328 = vld [vmem:[#allocation2 + $0x118] sm:$0xff]
    %v1329 = vld [vmem:[#allocation2 + $0x120] sm:$0xff]
    %v1330 = vld [vmem:[#allocation2 + $0x128] sm:$0xff]
    %v1331 = vld [vmem:[#allocation2 + $0x130] sm:$0xff]
    %v1332 = vpack.c.bf16 %v1328, %v1327
    %v1333 = vpack.c.bf16 %v1330, %v1329
    %v1334 = vpack.c.bf16 %v1331, %v1331
    %v1336 = vsel %vm1305, %v1334, 0
    %1338 = vmatpush.bf16.msra.mxu0 0
    %1339 = vmatpush.bf16.msra.mxu0 0
    %1340 = vmatpush.bf16.msra.mxu0 0
    %1341 = vmatpush.bf16.msra.mxu0 0
    %1342 = vmatpush.bf16.msra.mxu0 0
    %1343 = vmatpush.bf16.msra.mxu0 %v1336
    %1344 = vmatpush.bf16.msra.mxu0 %v1333
    %1345 = vmatpush.bf16.msra.mxu0 %v1332
    %1346 = vmatmul.bf16.gmra.mxu0 %v1300
    %v1347 = vpop.f32.mrf.mxu0
    %v1348 = vadd.f32 0.0, %v1347
    %v1349 = vpop.f32.mrf.mxu0
    %v1350 = vadd.f32 0.0, %v1349
    %1351 = vmatmul.bf16.gmra.mxu0 %v1303
    %v1352 = vpop.f32.mrf.mxu0
    %v1353 = vadd.f32 0.0, %v1352
    %v1354 = vpop.f32.mrf.mxu0
    %1355 = vdwg.mxu0
    %v1356 = vld [vmem:[#allocation2 + $0x138] sm:$0x1]
    %vm1359 = vcmask 1046528
    %v1360 = vrot.slane %v1348, 1
    %v1361 = vrot.slane %v1350, 1
    %v1362 = vsel %vm1359, %v1360, %v1361
    %v1365 = vadd.f32 %v1319, %v1362
    %v1366 = vadd.f32 %v1321, %v1361
    %v1367 = vperm.slane %v1356, 0
    %v1368 = vadd.f32 %v1365, %v1367
    %v1369 = vadd.f32 %v1366, %v1367
    %v1370 = vmax.f32 %v1368, 0.0
    %v1371 = vmax.f32 %v1369, 0.0
    %vm1372 = vcmask 64512
    %v1373 = vsel %vm1372, %v1370, -inf
    %vm1374 = vcmask 57344
    %v1375 = vsel %vm1374, %v1371, -inf
    %v1376 = vmax.f32 %v1373, %v1375
    %v1377 = vrot.slane %v1376, 4
    %v1378 = vmax.f32 %v1376, %v1377
    %v1379 = vrot.slane %v1378, 2
    %v1380 = vmax.f32 %v1378, %v1379
    %v1381 = vrot.slane %v1380, 1
    %v1382 = vmax.f32 %v1380, %v1381
    %v1384 = vrot.slane %v1353, 1
    %v1385 = vsel %vm1359, %v1361, %v1384
    %v1388 = vadd.f32 %v1321, %v1385
    %v1389 = vadd.f32 %v1324, %v1384
    %v1390 = vadd.f32 %v1388, %v1367
    %v1391 = vadd.f32 %v1389, %v1367
    %v1392 = vmax.f32 %v1390, 0.0
    %v1393 = vmax.f32 %v1391, 0.0
    %vm1394 = vcmask 64514
    %v1395 = vsel %vm1394, %v1392, -inf
    %vm1396 = vcmask 59392
    %v1397 = vsel %vm1396, %v1393, -inf
    %v1398 = vmax.f32 %v1395, %v1397
    %v1399 = vrot.slane %v1398, 4
    %v1400 = vmax.f32 %v1398, %v1399
    %v1401 = vrot.slane %v1400, 2
    %v1402 = vmax.f32 %v1400, %v1401
    %v1403 = vrot.slane %v1402, 1
    %v1404 = vmax.f32 %v1402, %v1403
    %v1405 = vsel %vm66, %v1382, %v1404
    %v1406 = vld [vmem:[#allocation2 + $0x140] sm:$0xff]
    %v1407 = vld [vmem:[#allocation2 + $0x148] sm:$0xff]
    %v1408 = vld [vmem:[#allocation2 + $0x150] sm:$0xff]
    %v1409 = vld [vmem:[#allocation2 + $0x158] sm:$0xff]
    %v1410 = vld [vmem:[#allocation2 + $0x160] sm:$0xff]
    %v1411 = vpack.c.bf16 %v1407, %v1406
    %v1412 = vpack.c.bf16 %v1409, %v1408
    %v1413 = vpack.c.bf16 %v1410, %v1410
    %v1415 = vsel %vm1305, %v1413, 0
    %1417 = vmatpush.bf16.msra.mxu0 0
    %1418 = vmatpush.bf16.msra.mxu0 0
    %1419 = vmatpush.bf16.msra.mxu0 0
    %1420 = vmatpush.bf16.msra.mxu0 0
    %1421 = vmatpush.bf16.msra.mxu0 0
    %1422 = vmatpush.bf16.msra.mxu0 %v1415
    %1423 = vmatpush.bf16.msra.mxu0 %v1412
    %1424 = vmatpush.bf16.msra.mxu0 %v1411
    %1425 = vmatmul.bf16.gmra.mxu0 %v1300
    %v1426 = vpop.f32.mrf.mxu0
    %v1427 = vadd.f32 0.0, %v1426
    %v1428 = vpop.f32.mrf.mxu0
    %v1429 = vadd.f32 0.0, %v1428
    %1430 = vmatmul.bf16.gmra.mxu0 %v1303
    %v1431 = vpop.f32.mrf.mxu0
    %v1432 = vadd.f32 0.0, %v1431
    %v1433 = vpop.f32.mrf.mxu0
    %1434 = vdwg.mxu0
    %v1435 = vld [vmem:[#allocation2 + $0x168] sm:$0xff]
    %v1436 = vld [vmem:[#allocation2 + $0x170] sm:$0xff]
    %v1437 = vld [vmem:[#allocation2 + $0x178] sm:$0xff]
    %v1438 = vld [vmem:[#allocation2 + $0x180] sm:$0xff]
    %v1439 = vld [vmem:[#allocation2 + $0x188] sm:$0xff]
    %v1440 = vpack.c.bf16 %v1436, %v1435
    %v1441 = vpack.c.bf16 %v1438, %v1437
    %v1442 = vpack.c.bf16 %v1439, %v1439
    %v1444 = vsel %vm1305, %v1442, 0
    %1446 = vmatpush.bf16.msra.mxu0 0
    %1447 = vmatpush.bf16.msra.mxu0 0
    %1448 = vmatpush.bf16.msra.mxu0 0
    %1449 = vmatpush.bf16.msra.mxu0 0
    %1450 = vmatpush.bf16.msra.mxu0 0
    %1451 = vmatpush.bf16.msra.mxu0 %v1444
    %1452 = vmatpush.bf16.msra.mxu0 %v1441
    %1453 = vmatpush.bf16.msra.mxu0 %v1440
    %1454 = vmatmul.bf16.gmra.mxu0 %v1300
    %v1455 = vpop.f32.mrf.mxu0
    %v1456 = vadd.f32 0.0, %v1455
    %v1457 = vpop.f32.mrf.mxu0
    %v1458 = vadd.f32 0.0, %v1457
    %1459 = vmatmul.bf16.gmra.mxu0 %v1303
    %v1460 = vpop.f32.mrf.mxu0
    %v1461 = vadd.f32 0.0, %v1460
    %v1462 = vpop.f32.mrf.mxu0
    %1463 = vdwg.mxu0
    %v1464 = vld [vmem:[#allocation2 + $0x190] sm:$0xff]
    %v1465 = vld [vmem:[#allocation2 + $0x198] sm:$0xff]
    %v1466 = vld [vmem:[#allocation2 + $0x1a0] sm:$0xff]
    %v1467 = vld [vmem:[#allocation2 + $0x1a8] sm:$0xff]
    %v1468 = vld [vmem:[#allocation2 + $0x1b0] sm:$0xff]
    %v1469 = vpack.c.bf16 %v1465, %v1464
    %v1470 = vpack.c.bf16 %v1467, %v1466
    %v1471 = vpack.c.bf16 %v1468, %v1468
    %v1473 = vsel %vm1305, %v1471, 0
    %1475 = vmatpush.bf16.msra.mxu0 0
    %1476 = vmatpush.bf16.msra.mxu0 0
    %1477 = vmatpush.bf16.msra.mxu0 0
    %1478 = vmatpush.bf16.msra.mxu0 0
    %1479 = vmatpush.bf16.msra.mxu0 0
    %1480 = vmatpush.bf16.msra.mxu0 %v1473
    %1481 = vmatpush.bf16.msra.mxu0 %v1470
    %1482 = vmatpush.bf16.msra.mxu0 %v1469
    %1483 = vmatmul.bf16.gmra.mxu0 %v1300
    %v1484 = vpop.f32.mrf.mxu0
    %v1485 = vadd.f32 0.0, %v1484
    %v1486 = vpop.f32.mrf.mxu0
    %v1487 = vadd.f32 0.0, %v1486
    %1488 = vmatmul.bf16.gmra.mxu0 %v1303
    %v1489 = vpop.f32.mrf.mxu0
    %v1490 = vadd.f32 0.0, %v1489
    %v1491 = vpop.f32.mrf.mxu0
    %1492 = vdwg.mxu0
    %v1493 = vld [vmem:[#allocation2 + $0x1b8] sm:$0x1]
    %v1496 = vrot.slane %v1456, 1
    %v1497 = vrot.slane %v1458, 1
    %v1498 = vsel %vm1359, %v1496, %v1497
    %v1500 = vadd.f32 %v1427, %v1498
    %vm1503 = vcmask 1045504
    %v1504 = vrot.slane %v1485, 2
    %v1505 = vrot.slane %v1487, 2
    %v1506 = vsel %vm1503, %v1504, %v1505
    %v1508 = vadd.f32 %v1500, %v1506
    %v1509 = vperm.slane %v1493, 0
    %v1510 = vadd.f32 %v1508, %v1509
    %v1511 = vmax.f32 %v1510, 0.0
    %v1512 = vsel %vm1372, %v1511, -inf
    %v1513 = vrot.slane %v1512, 4
    %v1514 = vmax.f32 %v1512, %v1513
    %v1515 = vrot.slane %v1514, 2
    %v1516 = vmax.f32 %v1514, %v1515
    %v1517 = vrot.slane %v1516, 1
    %v1518 = vmax.f32 %v1516, %v1517
    %v1520 = vrot.slane %v1461, 1
    %v1521 = vsel %vm1359, %v1497, %v1520
    %v1524 = vadd.f32 %v1429, %v1521
    %v1525 = vadd.f32 %v1432, %v1520
    %v1527 = vrot.slane %v1490, 2
    %v1528 = vsel %vm1503, %v1505, %v1527
    %v1531 = vadd.f32 %v1524, %v1528
    %v1532 = vadd.f32 %v1525, %v1527
    %v1533 = vadd.f32 %v1531, %v1509
    %v1534 = vadd.f32 %v1532, %v1509
    %v1535 = vmax.f32 %v1533, 0.0
    %v1536 = vmax.f32 %v1534, 0.0
    %v1537 = vsel %vm1394, %v1535, -inf
    %vm1538 = vcmask 58368
    %v1539 = vsel %vm1538, %v1536, -inf
    %v1540 = vmax.f32 %v1537, %v1539
    %v1541 = vrot.slane %v1540, 4
    %v1542 = vmax.f32 %v1540, %v1541
    %v1543 = vrot.slane %v1542, 2
    %v1544 = vmax.f32 %v1542, %v1543
    %v1545 = vrot.slane %v1544, 1
    %v1546 = vmax.f32 %v1544, %v1545
    %v1547 = vsel %vm66, %v1518, %v1546
    %v1549 = vsel %vm1372, %v1547, 0
    %1551 = vmatpush.msra.mxu0 0.0
    %1552 = vmatpush.msra.mxu0 0.0
    %1553 = vmatpush.msra.mxu0 0.0
    %1554 = vmatpush.msra.mxu0 0.0
    %1555 = vmatpush.msra.mxu0 0.0
    %1556 = vmatpush.msra.mxu0 0.0
    %1557 = vmatpush.msra.mxu0 0.0
    %1558 = vmatpush.msra.mxu0 0.0
    %1559 = vmatpush.msra.mxu0 0.0
    %1560 = vmatpush.msra.mxu0 0.0
    %1561 = vmatpush.msra.mxu0 0.0
    %1562 = vmatpush.msra.mxu0 0.0
    %1563 = vmatpush.msra.mxu0 0.0
    %1564 = vmatpush.msra.mxu0 0.0
    %1565 = vmatpush.msra.mxu0 0.0
    %1566 = vmatpush.msra.mxu0 %v1281
    %1567 = vmatmul.f32.gmra.mxu0 %v1549
    %v1568 = vpop.f32.mrf.mxu0
    %v1569 = vadd.f32 0.0, %v1568
    %1570 = vdwg.mxu0
    %v1572 = vsel %vm1372, %v1405, 0
    %1574 = vmatpush.msra.mxu0 0.0
    %1575 = vmatpush.msra.mxu0 0.0
    %1576 = vmatpush.msra.mxu0 0.0
    %1577 = vmatpush.msra.mxu0 0.0
    %1578 = vmatpush.msra.mxu0 0.0
    %1579 = vmatpush.msra.mxu0 0.0
    %1580 = vmatpush.msra.mxu0 0.0
    %1581 = vmatpush.msra.mxu0 0.0
    %1582 = vmatpush.msra.mxu0 0.0
    %1583 = vmatpush.msra.mxu0 0.0
    %1584 = vmatpush.msra.mxu0 0.0
    %1585 = vmatpush.msra.mxu0 0.0
    %1586 = vmatpush.msra.mxu0 0.0
    %1587 = vmatpush.msra.mxu0 0.0
    %1588 = vmatpush.msra.mxu0 0.0
    %1589 = vmatpush.msra.mxu0 %v1280
    %1590 = vmatmul.f32.gmra.mxu0 %v1572
    %v1591 = vpop.f32.mrf.mxu0
    %v1592 = vadd.f32 %v1569, %v1591
    %1593 = vdwg.mxu0
    %v1594 = vld [vmem:[#allocation2 + $0x1c0] sm:$0xff]
    %v1595 = vld [vmem:[#allocation2 + $0x1c8] sm:$0xff]
    %v1596 = vld [vmem:[#allocation2 + $0x1d0] sm:$0xff]
    %v1597 = vld [vmem:[#allocation2 + $0x1d8] sm:$0xff]
    %v1598 = vld [vmem:[#allocation2 + $0x1e0] sm:$0xff]
    %v1599 = vld [vmem:[#allocation2 + $0x1e8] sm:$0xff]
    %v1600 = vld [vmem:[#allocation2 + $0x1f0] sm:$0xff]
    %v1601 = vld [vmem:[#allocation2 + $0x1f8] sm:$0xff]
    %1603 = vrot.lane.b32.xlu0 %v1264, 32
    %v1604 = vpop.permute.xlu0 %1603
    %v1605 = vsel %vm144, %v1604, 0
    %1607 = vmatpush.msra.mxu0 0.0
    %1608 = vmatpush.msra.mxu0 0.0
    %1609 = vmatpush.msra.mxu0 0.0
    %1610 = vmatpush.msra.mxu0 0.0
    %1611 = vmatpush.msra.mxu0 0.0
    %1612 = vmatpush.msra.mxu0 0.0
    %1613 = vmatpush.msra.mxu0 0.0
    %1614 = vmatpush.msra.mxu0 0.0
    %1615 = vmatpush.msra.mxu0 0.0
    %1616 = vmatpush.msra.mxu0 0.0
    %1617 = vmatpush.msra.mxu0 0.0
    %1618 = vmatpush.msra.mxu0 0.0
    %1619 = vmatpush.msra.mxu0 %v1601
    %1620 = vmatpush.msra.mxu0 %v1600
    %1621 = vmatpush.msra.mxu0 %v1599
    %1622 = vmatpush.msra.mxu0 %v1598
    %1623 = vmatmul.f32.gmra.mxu0 %v1605
    %v1624 = vpop.f32.mrf.mxu0
    %v1625 = vadd.f32 0.0, %v1624
    %1626 = vdwg.mxu0
    %1628 = vrot.lane.b32.xlu0 %v1146, 32
    %v1629 = vpop.permute.xlu0 %1628
    %v1630 = vsel %vm144, %v1629, 0
    %1632 = vmatpush.msra.mxu0 0.0
    %1633 = vmatpush.msra.mxu0 0.0
    %1634 = vmatpush.msra.mxu0 0.0
    %1635 = vmatpush.msra.mxu0 0.0
    %1636 = vmatpush.msra.mxu0 0.0
    %1637 = vmatpush.msra.mxu0 0.0
    %1638 = vmatpush.msra.mxu0 0.0
    %1639 = vmatpush.msra.mxu0 0.0
    %1640 = vmatpush.msra.mxu0 0.0
    %1641 = vmatpush.msra.mxu0 0.0
    %1642 = vmatpush.msra.mxu0 0.0
    %1643 = vmatpush.msra.mxu0 0.0
    %1644 = vmatpush.msra.mxu0 %v1597
    %1645 = vmatpush.msra.mxu0 %v1596
    %1646 = vmatpush.msra.mxu0 %v1595
    %1647 = vmatpush.msra.mxu0 %v1594
    %1648 = vmatmul.f32.gmra.mxu0 %v1630
    %v1649 = vpop.f32.mrf.mxu0
    %v1650 = vadd.f32 %v1625, %v1649
    %1651 = vdwg.mxu0
    %v1652 = vadd.f32 %v1650, %v1592
    %v1653 = vld [vmem:[#allocation2 + $0x210] sm:$0x1]
    %v1654 = vperm.slane %v1653, 0
    %v1655 = vadd.f32 %v1652, %v1654
    %vm1656 = vcmask 9216
    %1657 = vst.msk [vmem:[#allocation5] sm:$0x3] %vm1656, %v1655
    // Predicated region
    $region18: #{tpu_custom_call.1} parent=1 // pred_check
      _
    $region19: #{tpu_custom_call.1} parent=1 // pred_check_branch
      %1659 = sbr.rel (0) target = $region21
    $region20: #{tpu_custom_call.1} parent=1 // pred_region
      %1661 = vsyncadd [#allocation4], 0
      %s1663 = sshll.u32 [#allocation5], 4
      %s1664 = int_to_ptr.vmem [resolvable:$true] %s1663
      %s1665 = sshll.u32 %s3, 4
      %s1666 = int_to_ptr.hbm [resolvable:$true] %s1665
      %1668 = dma.vmem_to_hbm [thread:$0]  %s1664, 32, %s1666, [#allocation4]
    $region21: #{tpu_custom_call.1} parent=1 // pred_fallthru
      _
    // Predicated region
    $region22: #{tpu_custom_call.1} parent=1 // pred_check
      _
    $region23: #{tpu_custom_call.1} parent=1 // pred_check_branch
      %1670 = sbr.rel (0) target = $region25
    $region24: #{tpu_custom_call.1} parent=1 // pred_region
      %1672 = dma.done [#allocation4], 32
    $region25: #{tpu_custom_call.1} parent=1 // pred_fallthru
      _
    %1673 = vsyncpa [#allocation3], 1
    %1674 = vsyncpa [#allocation4], 1

</llo_original>
